<compile_context>
chip_gen: v7x
topology: tpu7x:2x2x1
jax: 0.10.0
libtpu: 0.0.40
codegen_flags: <defaults>
</compile_context>

<pallas_src>
import functools
import math

import jax
import jax.numpy as jnp
from jax import lax
from jax.experimental import pallas as pl
from jax.experimental.pallas import tpu as pltpu


# ------------------------------ Pallas kernel -------------------------------

def _fused_mha_kernel(q_ref, k_ref, v_ref, mask_ref,
                      wq_ref, wk_ref, wv_ref, wo_ref, bo_ref,
                      o_ref,
                      k_proj, v_proj,
                      *, heads, head_dim, inv_scale, compute_dtype):
    """One (batch, q-block) step of the fused multi-head attention.

    Block shapes:
      q_ref    (1, TQ, E)      compute_dtype
      k_ref    (1, Lk, E)      compute_dtype
      v_ref    (1, Lv, E)      compute_dtype
      mask_ref (1, 1, TQ, Lk)  float32 (0.0 == masked; shared across heads)
      wq/wk/wv (E, E)          compute_dtype (block-diagonal per-head weights)
      wo       (E, E)          compute_dtype
      bo       (1, E)          float32
      o_ref    (1, TQ, E)      float32
      k_proj   (Lk, E)         compute_dtype  VMEM scratch (projected keys)
      v_proj   (Lv, E)         compute_dtype  VMEM scratch (projected values)
    """
    f32 = jnp.float32
    cd = compute_dtype
    qi = pl.program_id(1)

    # Project K/V once per batch element (first q-block) and carry them in
    # VMEM scratch across the remaining q-blocks of this batch element.
    @pl.when(qi == 0)
    def _():
        k_proj[...] = jnp.dot(k_ref[0], wk_ref[...],
                              preferred_element_type=f32).astype(k_proj.dtype)
        v_proj[...] = jnp.dot(v_ref[0], wv_ref[...],
                              preferred_element_type=f32).astype(v_proj.dtype)

    # Q projection with the 1/sqrt(embed_size) softmax scaling folded in.
    q = (jnp.dot(q_ref[0], wq_ref[...], preferred_element_type=f32)
         * jnp.float32(inv_scale))                                 # (TQ, E) f32

    # Additive mask bias, hoisted out of the head loop: one select total,
    # then one VPU add per head.
    neg_bias = jnp.where(mask_ref[0, 0] == 0.0,
                         jnp.float32(-1e20), jnp.float32(0.0))     # (TQ, Lk)

    k = k_proj[...]                                                # (Lk, E) cd
    v = v_proj[...]                                                # (Lv, E) cd

    ctx_parts = []
    # Static (unrolled) loop over heads; per-head lane slices of the E axis.
    for h in range(heads):
        lo = h * head_dim
        hi = lo + head_dim
        qh = q[:, lo:hi].astype(cd)        # (TQ, Dh)
        kh = k[:, lo:hi]                   # (Lk, Dh)
        vh = v[:, lo:hi]                   # (Lv, Dh)

        # energy[q, l] = sum_d qh[q, d] * kh[l, d]  (torch 'bqhd,bkhd->bhqk')
        e = lax.dot_general(qh, kh, (((1,), (1,)), ((), ())),
                            preferred_element_type=f32)            # (TQ, Lk)
        e = e + neg_bias
        e = e - jnp.max(e, axis=-1, keepdims=True)
        p = jnp.exp(e)
        p = p * pl.reciprocal(jnp.sum(p, axis=-1, keepdims=True), approx=True)

        ctx_parts.append(jnp.dot(p.astype(cd), vh,
                                 preferred_element_type=f32))      # (TQ, Dh)

    # Heads concatenated along lanes == torch reshape(B, Lq, heads*head_dim).
    ctx = jnp.concatenate(ctx_parts, axis=-1)                      # (TQ, E)

    # fc_out: lane-dense (TQ, E) @ (E, E) + bias.
    out = jnp.dot(ctx.astype(cd), wo_ref[...], preferred_element_type=f32)
    o_ref[0] = (out + bo_ref[...]).astype(o_ref.dtype)


# --------------------------------- wrapper ----------------------------------

def self_attention_forward(params, values, keys, query, mask, embed_size, heads,
                           *, q_block=None, compute_dtype=jnp.bfloat16):
    """Pallas equivalent of SelfAttention.forward(values, keys, query, mask).

    values/keys/query: (B, L*, embed_size); mask broadcastable to
    (B, 1, Lq, Lk) (0 == masked) or None. Returns (B, Lq, embed_size) f32.
    """
    B, Lq, E = query.shape
    Lk = keys.shape[1]
    Lv = values.shape[1]
    assert E == embed_size and E % heads == 0
    Dh = E // heads

    # Fold the shared per-head (Dh, Dh) projections into block-diagonal (E, E)
    # weights so the kernel runs one lane-dense E-wide matmul per projection.
    eye = jnp.eye(heads, dtype=jnp.float32)
    wq = jnp.kron(eye, params["Wq"].astype(jnp.float32)).astype(compute_dtype)
    wk = jnp.kron(eye, params["Wk"].astype(jnp.float32)).astype(compute_dtype)
    wv = jnp.kron(eye, params["Wv"].astype(jnp.float32)).astype(compute_dtype)
    wo = params["Wo"].astype(compute_dtype)
    bo = params["bo"].reshape(1, E).astype(jnp.float32)

    # Mask stays (B, 1, Lq, Lk): the head axis is NOT materialized.
    if mask is None:
        mask_b = jnp.ones((B, 1, Lq, Lk), jnp.float32)
    else:
        mask_b = jnp.broadcast_to(mask, (B, 1, Lq, Lk)).astype(jnp.float32)

    if q_block is None:
        q_block = Lq if Lq <= 256 else 256
    assert Lq % q_block == 0, "Lq must be divisible by q_block"
    nq = Lq // q_block

    kern = functools.partial(
        _fused_mha_kernel, heads=heads, head_dim=Dh,
        inv_scale=1.0 / math.sqrt(embed_size), compute_dtype=compute_dtype)

    grid_spec = pltpu.PrefetchScalarGridSpec(
        num_scalar_prefetch=0,
        grid=(B, nq),
        in_specs=[
            pl.BlockSpec((1, q_block, E), lambda b, i: (b, i, 0)),       # query
            pl.BlockSpec((1, Lk, E), lambda b, i: (b, 0, 0)),            # keys
            pl.BlockSpec((1, Lv, E), lambda b, i: (b, 0, 0)),            # values
            pl.BlockSpec((1, 1, q_block, Lk), lambda b, i: (b, 0, i, 0)),  # mask
            pl.BlockSpec((E, E), lambda b, i: (0, 0)),                   # Wq (bd)
            pl.BlockSpec((E, E), lambda b, i: (0, 0)),                   # Wk (bd)
            pl.BlockSpec((E, E), lambda b, i: (0, 0)),                   # Wv (bd)
            pl.BlockSpec((E, E), lambda b, i: (0, 0)),                   # Wo
            pl.BlockSpec((1, E), lambda b, i: (0, 0)),                   # bo
        ],
        out_specs=pl.BlockSpec((1, q_block, E), lambda b, i: (b, i, 0)),
        scratch_shapes=[
            pltpu.VMEM((Lk, E), compute_dtype),   # projected keys, per-b carry
            pltpu.VMEM((Lv, E), compute_dtype),   # projected values, per-b carry
        ],
    )

    return pl.pallas_call(
        kern,
        out_shape=jax.ShapeDtypeStruct((B, Lq, E), jnp.float32),
        grid_spec=grid_spec,
        compiler_params=pltpu.CompilerParams(
            # q-axis must be "arbitrary": k_proj/v_proj scratch is written at
            # q-block 0 and reused by later q-blocks of the same batch element.
            dimension_semantics=("parallel", "arbitrary")),
    )(query.astype(compute_dtype), keys.astype(compute_dtype),
      values.astype(compute_dtype), mask_b, wq, wk, wv, wo, bo)


# ---------------------------- pure-JAX reference ----------------------------

def self_attention_reference(params, values, keys, query, mask, embed_size, heads):
    B, Lq, E = query.shape
    Dh = E // heads
    v = values.reshape(B, -1, heads, Dh) @ params["Wv"]
    k = keys.reshape(B, -1, heads, Dh) @ params["Wk"]
    q = query.reshape(B, Lq, heads, Dh) @ params["Wq"]
    energy = jnp.einsum("bqhd,bkhd->bhqk", q, k)
    if mask is not None:
        m = jnp.broadcast_to(mask, energy.shape)
        energy = jnp.where(m == 0, jnp.float32(-1e20), energy)
    attn = jax.nn.softmax(energy / math.sqrt(embed_size), axis=3)
    out = jnp.einsum("bhql,blhd->bqhd", attn, v).reshape(B, Lq, E)
    return out @ params["Wo"] + params["bo"]


# ----------------------------------- main ------------------------------------

if __name__ == "__main__":
    B, L, E, H = 2, 8, 32, 4          # batch=2, seq=8, embed=32, heads=4
    Dh = E // H

    key = jax.random.PRNGKey(0)
    kv, kk, kq, kwv, kwk, kwq, kwo = jax.random.split(key, 7)

    params = dict(
        # matmul-ready weights (x @ W); linear layers with no / with bias
        Wv=jax.random.normal(kwv, (Dh, Dh), jnp.float32) / math.sqrt(Dh),
        Wk=jax.random.normal(kwk, (Dh, Dh), jnp.float32) / math.sqrt(Dh),
        Wq=jax.random.normal(kwq, (Dh, Dh), jnp.float32) / math.sqrt(Dh),
        Wo=jax.random.normal(kwo, (E, E), jnp.float32) / math.sqrt(E),
        bo=jnp.zeros((E,), jnp.float32),
    )

    values = jax.random.normal(kv, (B, L, E), jnp.float32)
    keys_in = jax.random.normal(kk, (B, L, E), jnp.float32)
    query = jax.random.normal(kq, (B, L, E), jnp.float32)

    # padding-style mask (B, 1, 1, L): batch 1 has its last two keys masked out
    lengths = jnp.array([L, L - 2], jnp.int32)
    mask = (jnp.arange(L)[None, :] < lengths[:, None]).astype(jnp.float32)
    mask = mask[:, None, None, :]                     # (B, 1, 1, L)

    out = self_attention_forward(params, values, keys_in, query, mask, E, H)
    out = jax.block_until_ready(out)

    ref = self_attention_reference(params, values, keys_in, query, mask, E, H)
    assert out.shape == (B, L, E)
    max_err = float(jnp.max(jnp.abs(out - ref)))
    assert max_err < 5e-2, f"max abs error vs reference: {max_err}"
    print("KERNEL_OK")
</pallas_src>

<mosaic_0001>
module attributes {stable_mosaic.version = 11 : i64} {
  func.func @_fused_mha_kernel(%arg0: i32, %arg1: i32, %arg2: memref<1x8x32xbf16, #tpu.memory_space<vmem>>, %arg3: memref<1x8x32xbf16, #tpu.memory_space<vmem>>, %arg4: memref<1x8x32xbf16, #tpu.memory_space<vmem>>, %arg5: memref<1x1x8x8xf32, #tpu.memory_space<vmem>>, %arg6: memref<32x32xbf16, #tpu.memory_space<vmem>>, %arg7: memref<32x32xbf16, #tpu.memory_space<vmem>>, %arg8: memref<32x32xbf16, #tpu.memory_space<vmem>>, %arg9: memref<32x32xbf16, #tpu.memory_space<vmem>>, %arg10: memref<1x32xf32, #tpu.memory_space<vmem>>, %arg11: memref<1x8x32xf32, #tpu.memory_space<vmem>>, %arg12: memref<8x32xbf16, #tpu.memory_space<vmem>>, %arg13: memref<8x32xbf16, #tpu.memory_space<vmem>>) attributes {dimension_semantics = [#tpu.dimension_semantics<parallel>, #tpu.dimension_semantics<arbitrary>], iteration_bounds = array<i64: 2, 1>, scalar_prefetch = 0 : i64, scratch_operands = 2 : i64, tpu.core_type = #tpu.core_type<tc>, window_params = [{transform_indices = @transform_0, window_bounds = array<i64: 1, 8, 32>}, {transform_indices = @transform_1, window_bounds = array<i64: 1, 8, 32>}, {transform_indices = @transform_2, window_bounds = array<i64: 1, 8, 32>}, {transform_indices = @transform_3, window_bounds = array<i64: 1, 1, 8, 8>}, {pipeline_mode = #tpu.pipeline_mode<synchronous>, transform_indices = @transform_4, window_bounds = array<i64: 32, 32>}, {pipeline_mode = #tpu.pipeline_mode<synchronous>, transform_indices = @transform_5, window_bounds = array<i64: 32, 32>}, {pipeline_mode = #tpu.pipeline_mode<synchronous>, transform_indices = @transform_6, window_bounds = array<i64: 32, 32>}, {pipeline_mode = #tpu.pipeline_mode<synchronous>, transform_indices = @transform_7, window_bounds = array<i64: 32, 32>}, {pipeline_mode = #tpu.pipeline_mode<synchronous>, transform_indices = @transform_8, window_bounds = array<i64: 1, 32>}, {transform_indices = @transform_9, window_bounds = array<i64: 1, 8, 32>}]} {
    %c0_i32 = arith.constant 0 : i32
    %0 = arith.cmpi eq, %arg1, %c0_i32 : i32
    %1 = arith.extui %0 : i1 to i32
    %c0_i32_0 = arith.constant 0 : i32
    %2 = arith.cmpi ne, %1, %c0_i32_0 : i32
    scf.if %2 {
      %c0_41 = arith.constant 0 : index
      %c0_42 = arith.constant 0 : index
      %c0_43 = arith.constant 0 : index
      %100 = vector.load %arg3[%c0_41, %c0_42, %c0_43] : memref<1x8x32xbf16, #tpu.memory_space<vmem>>, vector<1x8x32xbf16>
      %101 = vector.shape_cast %100 : vector<1x8x32xbf16> to vector<8x32xbf16>
      %c0_44 = arith.constant 0 : index
      %c0_45 = arith.constant 0 : index
      %102 = vector.load %arg7[%c0_44, %c0_45] : memref<32x32xbf16, #tpu.memory_space<vmem>>, vector<32x32xbf16>
      %cst_46 = arith.constant dense<0.000000e+00> : vector<8x32xf32>
      %103 = tpu.matmul %101, %102, %cst_46 {dimension_numbers = #tpu.dot_dimension_numbers<[1], [0], [0], [1], [0, 0, 1, 1], [], []>} : vector<8x32xbf16>, vector<32x32xbf16>, vector<8x32xf32> -> vector<8x32xf32>
      %104 = arith.truncf %103 : vector<8x32xf32> to vector<8x32xbf16>
      %c0_47 = arith.constant 0 : index
      %c0_48 = arith.constant 0 : index
      %105 = vector.load %arg12[%c0_47, %c0_48] : memref<8x32xbf16, #tpu.memory_space<vmem>>, vector<8x32xbf16>
      tpu.vector_store %arg12[%c0_47, %c0_48], %104 {strides = array<i32>} : memref<8x32xbf16, #tpu.memory_space<vmem>>, vector<8x32xbf16>,
      %c0_49 = arith.constant 0 : index
      %c0_50 = arith.constant 0 : index
      %c0_51 = arith.constant 0 : index
      %106 = vector.load %arg4[%c0_49, %c0_50, %c0_51] : memref<1x8x32xbf16, #tpu.memory_space<vmem>>, vector<1x8x32xbf16>
      %107 = vector.shape_cast %106 : vector<1x8x32xbf16> to vector<8x32xbf16>
      %c0_52 = arith.constant 0 : index
      %c0_53 = arith.constant 0 : index
      %108 = vector.load %arg8[%c0_52, %c0_53] : memref<32x32xbf16, #tpu.memory_space<vmem>>, vector<32x32xbf16>
      %cst_54 = arith.constant dense<0.000000e+00> : vector<8x32xf32>
      %109 = tpu.matmul %107, %108, %cst_54 {dimension_numbers = #tpu.dot_dimension_numbers<[1], [0], [0], [1], [0, 0, 1, 1], [], []>} : vector<8x32xbf16>, vector<32x32xbf16>, vector<8x32xf32> -> vector<8x32xf32>
      %110 = arith.truncf %109 : vector<8x32xf32> to vector<8x32xbf16>
      %c0_55 = arith.constant 0 : index
      %c0_56 = arith.constant 0 : index
      %111 = vector.load %arg13[%c0_55, %c0_56] : memref<8x32xbf16, #tpu.memory_space<vmem>>, vector<8x32xbf16>
      tpu.vector_store %arg13[%c0_55, %c0_56], %110 {strides = array<i32>} : memref<8x32xbf16, #tpu.memory_space<vmem>>, vector<8x32xbf16>,
    } else {
    }
    %c0 = arith.constant 0 : index
    %c0_1 = arith.constant 0 : index
    %c0_2 = arith.constant 0 : index
    %3 = vector.load %arg2[%c0, %c0_1, %c0_2] : memref<1x8x32xbf16, #tpu.memory_space<vmem>>, vector<1x8x32xbf16>
    %4 = vector.shape_cast %3 : vector<1x8x32xbf16> to vector<8x32xbf16>
    %c0_3 = arith.constant 0 : index
    %c0_4 = arith.constant 0 : index
    %5 = vector.load %arg6[%c0_3, %c0_4] : memref<32x32xbf16, #tpu.memory_space<vmem>>, vector<32x32xbf16>
    %cst = arith.constant dense<0.000000e+00> : vector<8x32xf32>
    %6 = tpu.matmul %4, %5, %cst {dimension_numbers = #tpu.dot_dimension_numbers<[1], [0], [0], [1], [0, 0, 1, 1], [], []>} : vector<8x32xbf16>, vector<32x32xbf16>, vector<8x32xf32> -> vector<8x32xf32>
    %cst_5 = arith.constant 0.176776692 : f32
    %7 = vector.broadcast %cst_5 : f32 to vector<8x32xf32>
    %8 = arith.mulf %6, %7 : vector<8x32xf32>
    %c0_6 = arith.constant 0 : index
    %c0_7 = arith.constant 0 : index
    %c0_8 = arith.constant 0 : index
    %c0_9 = arith.constant 0 : index
    %9 = vector.load %arg5[%c0_6, %c0_7, %c0_8, %c0_9] : memref<1x1x8x8xf32, #tpu.memory_space<vmem>>, vector<1x1x8x8xf32>
    %10 = vector.shape_cast %9 : vector<1x1x8x8xf32> to vector<8x8xf32>
    %cst_10 = arith.constant 0.000000e+00 : f32
    %11 = vector.broadcast %cst_10 : f32 to vector<8x8xf32>
    %12 = arith.cmpf oeq, %10, %11 : vector<8x8xf32>
    %cst_11 = arith.constant -1.000000e+20 : f32
    %cst_12 = arith.constant 0.000000e+00 : f32
    %13 = vector.broadcast %cst_11 : f32 to vector<8x8xf32>
    %14 = vector.broadcast %cst_12 : f32 to vector<8x8xf32>
    %15 = arith.select %12, %13, %14 : vector<8x8xi1>, vector<8x8xf32>
    %c0_13 = arith.constant 0 : index
    %c0_14 = arith.constant 0 : index
    %16 = vector.load %arg12[%c0_13, %c0_14] : memref<8x32xbf16, #tpu.memory_space<vmem>>, vector<8x32xbf16>
    %c0_15 = arith.constant 0 : index
    %c0_16 = arith.constant 0 : index
    %17 = vector.load %arg13[%c0_15, %c0_16] : memref<8x32xbf16, #tpu.memory_space<vmem>>, vector<8x32xbf16>
    %18 = vector.extract_strided_slice %8 {offsets = [0, 0], sizes = [8, 8], strides = [1, 1]} : vector<8x32xf32> to vector<8x8xf32>
    %19 = arith.truncf %18 : vector<8x8xf32> to vector<8x8xbf16>
    %20 = vector.extract_strided_slice %16 {offsets = [0, 0], sizes = [8, 8], strides = [1, 1]} : vector<8x32xbf16> to vector<8x8xbf16>
    %21 = vector.extract_strided_slice %17 {offsets = [0, 0], sizes = [8, 8], strides = [1, 1]} : vector<8x32xbf16> to vector<8x8xbf16>
    %cst_17 = arith.constant dense<0.000000e+00> : vector<8x8xf32>
    %22 = tpu.matmul %19, %20, %cst_17 {dimension_numbers = #tpu.dot_dimension_numbers<[1], [1], [0], [0], [0, 0, 1, 0], [], []>} : vector<8x8xbf16>, vector<8x8xbf16>, vector<8x8xf32> -> vector<8x8xf32>
    %23 = arith.addf %22, %15 : vector<8x8xf32>
    %cst_18 = arith.constant dense<0xFF800000> : vector<8xf32>
    %24 = vector.multi_reduction <maximumf>, %23, %cst_18 [1] : vector<8x8xf32> to vector<8xf32>
    %25 = vector.shape_cast %24 : vector<8xf32> to vector<8x1xf32>
    %26 = vector.broadcast %25 : vector<8x1xf32> to vector<8x8xf32>
    %27 = arith.subf %23, %26 : vector<8x8xf32>
    %28 = math.exp %27 : vector<8x8xf32>
    %cst_19 = arith.constant dense<0.000000e+00> : vector<8xf32>
    %29 = vector.multi_reduction <add>, %28, %cst_19 [1] : vector<8x8xf32> to vector<8xf32>
    %30 = vector.shape_cast %29 : vector<8xf32> to vector<8x1xf32>
    %31 = tpu.reciprocal %30 {approx = true} : vector<8x1xf32> -> vector<8x1xf32>
    %32 = vector.broadcast %31 : vector<8x1xf32> to vector<8x8xf32>
    %33 = arith.mulf %28, %32 : vector<8x8xf32>
    %34 = arith.truncf %33 : vector<8x8xf32> to vector<8x8xbf16>
    %cst_20 = arith.constant dense<0.000000e+00> : vector<8x8xf32>
    %35 = tpu.matmul %34, %21, %cst_20 {dimension_numbers = #tpu.dot_dimension_numbers<[1], [0], [0], [1], [0, 0, 1, 1], [], []>} : vector<8x8xbf16>, vector<8x8xbf16>, vector<8x8xf32> -> vector<8x8xf32>
    %36 = vector.extract_strided_slice %8 {offsets = [0, 8], sizes = [8, 8], strides = [1, 1]} : vector<8x32xf32> to vector<8x8xf32>
    %37 = arith.truncf %36 : vector<8x8xf32> to vector<8x8xbf16>
    %38 = vector.extract_strided_slice %16 {offsets = [0, 8], sizes = [8, 8], strides = [1, 1]} : vector<8x32xbf16> to vector<8x8xbf16>
    %39 = vector.extract_strided_slice %17 {offsets = [0, 8], sizes = [8, 8], strides = [1, 1]} : vector<8x32xbf16> to vector<8x8xbf16>
    %cst_21 = arith.constant dense<0.000000e+00> : vector<8x8xf32>
    %40 = tpu.matmul %37, %38, %cst_21 {dimension_numbers = #tpu.dot_dimension_numbers<[1], [1], [0], [0], [0, 0, 1, 0], [], []>} : vector<8x8xbf16>, vector<8x8xbf16>, vector<8x8xf32> -> vector<8x8xf32>
    %41 = arith.addf %40, %15 : vector<8x8xf32>
    %cst_22 = arith.constant dense<0xFF800000> : vector<8xf32>
    %42 = vector.multi_reduction <maximumf>, %41, %cst_22 [1] : vector<8x8xf32> to vector<8xf32>
    %43 = vector.shape_cast %42 : vector<8xf32> to vector<8x1xf32>
    %44 = vector.broadcast %43 : vector<8x1xf32> to vector<8x8xf32>
    %45 = arith.subf %41, %44 : vector<8x8xf32>
    %46 = math.exp %45 : vector<8x8xf32>
    %cst_23 = arith.constant dense<0.000000e+00> : vector<8xf32>
    %47 = vector.multi_reduction <add>, %46, %cst_23 [1] : vector<8x8xf32> to vector<8xf32>
    %48 = vector.shape_cast %47 : vector<8xf32> to vector<8x1xf32>
    %49 = tpu.reciprocal %48 {approx = true} : vector<8x1xf32> -> vector<8x1xf32>
    %50 = vector.broadcast %49 : vector<8x1xf32> to vector<8x8xf32>
    %51 = arith.mulf %46, %50 : vector<8x8xf32>
    %52 = arith.truncf %51 : vector<8x8xf32> to vector<8x8xbf16>
    %cst_24 = arith.constant dense<0.000000e+00> : vector<8x8xf32>
    %53 = tpu.matmul %52, %39, %cst_24 {dimension_numbers = #tpu.dot_dimension_numbers<[1], [0], [0], [1], [0, 0, 1, 1], [], []>} : vector<8x8xbf16>, vector<8x8xbf16>, vector<8x8xf32> -> vector<8x8xf32>
    %54 = vector.extract_strided_slice %8 {offsets = [0, 16], sizes = [8, 8], strides = [1, 1]} : vector<8x32xf32> to vector<8x8xf32>
    %55 = arith.truncf %54 : vector<8x8xf32> to vector<8x8xbf16>
    %56 = vector.extract_strided_slice %16 {offsets = [0, 16], sizes = [8, 8], strides = [1, 1]} : vector<8x32xbf16> to vector<8x8xbf16>
    %57 = vector.extract_strided_slice %17 {offsets = [0, 16], sizes = [8, 8], strides = [1, 1]} : vector<8x32xbf16> to vector<8x8xbf16>
    %cst_25 = arith.constant dense<0.000000e+00> : vector<8x8xf32>
    %58 = tpu.matmul %55, %56, %cst_25 {dimension_numbers = #tpu.dot_dimension_numbers<[1], [1], [0], [0], [0, 0, 1, 0], [], []>} : vector<8x8xbf16>, vector<8x8xbf16>, vector<8x8xf32> -> vector<8x8xf32>
    %59 = arith.addf %58, %15 : vector<8x8xf32>
    %cst_26 = arith.constant dense<0xFF800000> : vector<8xf32>
    %60 = vector.multi_reduction <maximumf>, %59, %cst_26 [1] : vector<8x8xf32> to vector<8xf32>
    %61 = vector.shape_cast %60 : vector<8xf32> to vector<8x1xf32>
    %62 = vector.broadcast %61 : vector<8x1xf32> to vector<8x8xf32>
    %63 = arith.subf %59, %62 : vector<8x8xf32>
    %64 = math.exp %63 : vector<8x8xf32>
    %cst_27 = arith.constant dense<0.000000e+00> : vector<8xf32>
    %65 = vector.multi_reduction <add>, %64, %cst_27 [1] : vector<8x8xf32> to vector<8xf32>
    %66 = vector.shape_cast %65 : vector<8xf32> to vector<8x1xf32>
    %67 = tpu.reciprocal %66 {approx = true} : vector<8x1xf32> -> vector<8x1xf32>
    %68 = vector.broadcast %67 : vector<8x1xf32> to vector<8x8xf32>
    %69 = arith.mulf %64, %68 : vector<8x8xf32>
    %70 = arith.truncf %69 : vector<8x8xf32> to vector<8x8xbf16>
    %cst_28 = arith.constant dense<0.000000e+00> : vector<8x8xf32>
    %71 = tpu.matmul %70, %57, %cst_28 {dimension_numbers = #tpu.dot_dimension_numbers<[1], [0], [0], [1], [0, 0, 1, 1], [], []>} : vector<8x8xbf16>, vector<8x8xbf16>, vector<8x8xf32> -> vector<8x8xf32>
    %72 = vector.extract_strided_slice %8 {offsets = [0, 24], sizes = [8, 8], strides = [1, 1]} : vector<8x32xf32> to vector<8x8xf32>
    %73 = arith.truncf %72 : vector<8x8xf32> to vector<8x8xbf16>
    %74 = vector.extract_strided_slice %16 {offsets = [0, 24], sizes = [8, 8], strides = [1, 1]} : vector<8x32xbf16> to vector<8x8xbf16>
    %75 = vector.extract_strided_slice %17 {offsets = [0, 24], sizes = [8, 8], strides = [1, 1]} : vector<8x32xbf16> to vector<8x8xbf16>
    %cst_29 = arith.constant dense<0.000000e+00> : vector<8x8xf32>
    %76 = tpu.matmul %73, %74, %cst_29 {dimension_numbers = #tpu.dot_dimension_numbers<[1], [1], [0], [0], [0, 0, 1, 0], [], []>} : vector<8x8xbf16>, vector<8x8xbf16>, vector<8x8xf32> -> vector<8x8xf32>
    %77 = arith.addf %76, %15 : vector<8x8xf32>
    %cst_30 = arith.constant dense<0xFF800000> : vector<8xf32>
    %78 = vector.multi_reduction <maximumf>, %77, %cst_30 [1] : vector<8x8xf32> to vector<8xf32>
    %79 = vector.shape_cast %78 : vector<8xf32> to vector<8x1xf32>
    %80 = vector.broadcast %79 : vector<8x1xf32> to vector<8x8xf32>
    %81 = arith.subf %77, %80 : vector<8x8xf32>
    %82 = math.exp %81 : vector<8x8xf32>
    %cst_31 = arith.constant dense<0.000000e+00> : vector<8xf32>
    %83 = vector.multi_reduction <add>, %82, %cst_31 [1] : vector<8x8xf32> to vector<8xf32>
    %84 = vector.shape_cast %83 : vector<8xf32> to vector<8x1xf32>
    %85 = tpu.reciprocal %84 {approx = true} : vector<8x1xf32> -> vector<8x1xf32>
    %86 = vector.broadcast %85 : vector<8x1xf32> to vector<8x8xf32>
    %87 = arith.mulf %82, %86 : vector<8x8xf32>
    %88 = arith.truncf %87 : vector<8x8xf32> to vector<8x8xbf16>
    %cst_32 = arith.constant dense<0.000000e+00> : vector<8x8xf32>
    %89 = tpu.matmul %88, %75, %cst_32 {dimension_numbers = #tpu.dot_dimension_numbers<[1], [0], [0], [1], [0, 0, 1, 1], [], []>} : vector<8x8xbf16>, vector<8x8xbf16>, vector<8x8xf32> -> vector<8x8xf32>
    %90 = tpu.concatenate %35, %53, %71, %89 in 1 : vector<8x8xf32>, vector<8x8xf32>, vector<8x8xf32>, vector<8x8xf32> -> vector<8x32xf32>
    %91 = arith.truncf %90 : vector<8x32xf32> to vector<8x32xbf16>
    %c0_33 = arith.constant 0 : index
    %c0_34 = arith.constant 0 : index
    %92 = vector.load %arg9[%c0_33, %c0_34] : memref<32x32xbf16, #tpu.memory_space<vmem>>, vector<32x32xbf16>
    %cst_35 = arith.constant dense<0.000000e+00> : vector<8x32xf32>
    %93 = tpu.matmul %91, %92, %cst_35 {dimension_numbers = #tpu.dot_dimension_numbers<[1], [0], [0], [1], [0, 0, 1, 1], [], []>} : vector<8x32xbf16>, vector<32x32xbf16>, vector<8x32xf32> -> vector<8x32xf32>
    %c0_36 = arith.constant 0 : index
    %c0_37 = arith.constant 0 : index
    %94 = vector.load %arg10[%c0_36, %c0_37] : memref<1x32xf32, #tpu.memory_space<vmem>>, vector<1x32xf32>
    %95 = vector.broadcast %94 : vector<1x32xf32> to vector<8x32xf32>
    %96 = arith.addf %93, %95 : vector<8x32xf32>
    %c0_38 = arith.constant 0 : index
    %c0_39 = arith.constant 0 : index
    %c0_40 = arith.constant 0 : index
    %97 = vector.load %arg11[%c0_38, %c0_39, %c0_40] : memref<1x8x32xf32, #tpu.memory_space<vmem>>, vector<1x8x32xf32>
    %98 = vector.shape_cast %97 : vector<1x8x32xf32> to vector<8x32xf32>
    %99 = vector.shape_cast %96 : vector<8x32xf32> to vector<1x8x32xf32>
    tpu.vector_store %arg11[%c0_38, %c0_39, %c0_40], %99 {strides = array<i32>} : memref<1x8x32xf32, #tpu.memory_space<vmem>>, vector<1x8x32xf32>,
    return
  }
  func.func @transform_0(%arg0: i32, %arg1: i32) -> (i32, i32, i32) {
    %c0_i32 = arith.constant 0 : i32
    %c0_i32_0 = arith.constant 0 : i32
    return %arg0, %arg1, %c0_i32 : i32, i32, i32
  }
  func.func @transform_1(%arg0: i32, %arg1: i32) -> (i32, i32, i32) {
    %c0_i32 = arith.constant 0 : i32
    %c0_i32_0 = arith.constant 0 : i32
    %c0_i32_1 = arith.constant 0 : i32
    return %arg0, %c0_i32, %c0_i32_0 : i32, i32, i32
  }
  func.func @transform_2(%arg0: i32, %arg1: i32) -> (i32, i32, i32) {
    %c0_i32 = arith.constant 0 : i32
    %c0_i32_0 = arith.constant 0 : i32
    %c0_i32_1 = arith.constant 0 : i32
    return %arg0, %c0_i32, %c0_i32_0 : i32, i32, i32
  }
  func.func @transform_3(%arg0: i32, %arg1: i32) -> (i32, i32, i32, i32) {
    %c0_i32 = arith.constant 0 : i32
    %c0_i32_0 = arith.constant 0 : i32
    %c0_i32_1 = arith.constant 0 : i32
    return %arg0, %c0_i32, %arg1, %c0_i32_0 : i32, i32, i32, i32
  }
  func.func @transform_4(%arg0: i32, %arg1: i32) -> (i32, i32) {
    %c0_i32 = arith.constant 0 : i32
    %c0_i32_0 = arith.constant 0 : i32
    %c0_i32_1 = arith.constant 0 : i32
    return %c0_i32, %c0_i32_0 : i32, i32
  }
  func.func @transform_5(%arg0: i32, %arg1: i32) -> (i32, i32) {
    %c0_i32 = arith.constant 0 : i32
    %c0_i32_0 = arith.constant 0 : i32
    %c0_i32_1 = arith.constant 0 : i32
    return %c0_i32, %c0_i32_0 : i32, i32
  }
  func.func @transform_6(%arg0: i32, %arg1: i32) -> (i32, i32) {
    %c0_i32 = arith.constant 0 : i32
    %c0_i32_0 = arith.constant 0 : i32
    %c0_i32_1 = arith.constant 0 : i32
    return %c0_i32, %c0_i32_0 : i32, i32
  }
  func.func @transform_7(%arg0: i32, %arg1: i32) -> (i32, i32) {
    %c0_i32 = arith.constant 0 : i32
    %c0_i32_0 = arith.constant 0 : i32
    %c0_i32_1 = arith.constant 0 : i32
    return %c0_i32, %c0_i32_0 : i32, i32
  }
  func.func @transform_8(%arg0: i32, %arg1: i32) -> (i32, i32) {
    %c0_i32 = arith.constant 0 : i32
    %c0_i32_0 = arith.constant 0 : i32
    %c0_i32_1 = arith.constant 0 : i32
    return %c0_i32, %c0_i32_0 : i32, i32
  }
  func.func @transform_9(%arg0: i32, %arg1: i32) -> (i32, i32, i32) {
    %c0_i32 = arith.constant 0 : i32
    %c0_i32_0 = arith.constant 0 : i32
    return %arg0, %arg1, %c0_i32 : i32, i32, i32
  }
}

</mosaic_0001>

<llo_original>
// kernel: tpu_custom_call.1
$region0: #{tpu_custom_call.1}
  #allocation0 [shape = 'u32[]', space=smem, size = 0x4, offset = 0x4, fixed_abs, tag = 'smem constant byte address 0x4 - core index']
  #allocation1 [shape = 'u32[144,128]{1,0:T(1,128)}', space=vmem, size = 0x12000, scoped, tag = 'internal scratch']
  #allocation2 [shape = 'bf16[8,32]{1,0:T(8,128)(2,1)}', space=vmem, size = 0x800, scoped, tag = 'scratch operand']
  #allocation3 [shape = 'bf16[8,32]{1,0:T(8,128)(2,1)}', space=vmem, size = 0x800, scoped, tag = 'scratch operand']
  %s0 = inlined_call_operand.hbm [shape: bf16[2,8,32], index: 0, kind: input, shape index: {}]
  %s1 = inlined_call_operand.hbm [shape: bf16[2,8,32], index: 1, kind: input, shape index: {}]
  %s2 = inlined_call_operand.hbm [shape: bf16[2,8,32], index: 2, kind: input, shape index: {}]
  %s3 = inlined_call_operand.hbm [shape: f32[2,1,8,8], index: 3, kind: input, shape index: {}]
  %s4 = inlined_call_operand.hbm [shape: bf16[32,32], index: 4, kind: input, shape index: {}]
  %s5 = inlined_call_operand.vmem [shape: bf16[32,32], index: 5, kind: input, shape index: {}]
  %s6 = inlined_call_operand.hbm [shape: bf16[32,32], index: 6, kind: input, shape index: {}]
  %s7 = inlined_call_operand.hbm [shape: bf16[32,32], index: 7, kind: input, shape index: {}]
  %s8 = inlined_call_operand.vmem [shape: f32[1,32], index: 8, kind: input, shape index: {}]
  %s9 = inlined_call_operand.hbm [shape: f32[2,8,32], index: 9, kind: output, shape index: {}]
  %s10 = sld [smem:[#allocation0]]
  $region101: #{tpu_custom_call.1} parent=0
    _
  %s12 = ssub.s32 1, %s10
  %s13 = scalar_select 0, %s12, %s10
  $region1: #{tpu_custom_call.1} parent=0
    #allocation4 [shape = 'u8[4096]{0}', space=vmem, size = 0x1000, scoped, tag = 'input window, operand 0']
    #allocation5 [shape = 's32[2]{0}', space=sflag, size = 0x8, scoped, tag = 'scoped memory for tpu_custom_call.1']
    #allocation6 [shape = 's32[2]{0}', space=sflag, size = 0x8, scoped, tag = 'scoped memory for tpu_custom_call.1']
    #allocation7 [shape = 'u8[4096]{0}', space=vmem, size = 0x1000, scoped, tag = 'input window, operand 1']
    #allocation8 [shape = 's32[2]{0}', space=sflag, size = 0x8, scoped, tag = 'scoped memory for tpu_custom_call.1']
    #allocation9 [shape = 'u8[4096]{0}', space=vmem, size = 0x1000, scoped, tag = 'input window, operand 2']
    #allocation10 [shape = 'u8[8192]{0}', space=vmem, size = 0x2000, scoped, tag = 'input window, operand 3']
    #allocation11 [shape = 's32[2]{0}', space=sflag, size = 0x8, scoped, tag = 'scoped memory for tpu_custom_call.1']
    #allocation12 [shape = 'u8[8192]{0}', space=vmem, size = 0x2000, scoped, tag = 'input window, operand 4, single buffered']
    #allocation13 [shape = 'u8[8192]{0}', space=vmem, size = 0x2000, scoped, tag = 'input window, operand 6, single buffered']
    #allocation14 [shape = 's32[1]{0}', space=sflag, size = 0x4, scoped, tag = 'scoped memory for tpu_custom_call.1']
    #allocation15 [shape = 'u8[8192]{0}', space=vmem, size = 0x2000, scoped, tag = 'input window, operand 7, single buffered']
    #allocation16 [shape = 'u8[8192]{0}', space=vmem, size = 0x2000, scoped, tag = 'output window, operand 0']
    %14 = vsyncpa [#allocation5], 0
    %s15 = scalar_lea.sflag [#allocation5], 1
    %16 = vsyncpa %s15, 0
    %17 = vsyncpa [#allocation8], 0
    %s18 = scalar_lea.sflag [#allocation8], 1
    %19 = vsyncpa %s18, 0
    %20 = vsyncpa [#allocation11], 0
    %s21 = scalar_lea.sflag [#allocation11], 1
    %22 = vsyncpa %s21, 0
    %23 = vsyncpa [#allocation14], 0
    %24 = vsyncpa [#allocation6], 0
    %s25 = scalar_lea.sflag [#allocation6], 1
    %26 = vsyncpa %s25, 0
    loop: start=0, step=1, limit=4
    $region2: #{tpu_custom_call.1} parent=1 // loop_pre_header
      _
    $region3: #{tpu_custom_call.1} parent=1 // loop_header
      %s28 = sphi 0, %s32
      %p29 = scmp.ge.s32.totalorder %s28, 4
      %s35 = sphi 0, %s47
      %s36 = sphi 0, %s43
      %s37 = sphi 0, %s35
      %s38 = sphi 0, %s36
      %s39 = sphi 0, %s37
      %s40 = sphi 0, %s38
      %s52 = sphi 0, %s54
      %s55 = sphi 0, %s52
      %s56 = sphi 0, %s55
      %s72 = sphi 0, %s56
      %s78 = sphi 0, %s80
      %s81 = sphi 0, %s78
      %s82 = sphi 0, %s81
      %s98 = sphi 0, %s82
      %s104 = sphi 0, %s106
      %s107 = sphi 0, %s104
      %s108 = sphi 0, %s107
      %s124 = sphi 0, %s108
      %s132 = sphi 0, %s134
      %s135 = sphi 0, %s132
      %s136 = sphi 0, %s135
      %s152 = sphi 0, %s136
      %s156 = sphi 0, %s156
      %s158 = sphi 0, %s156
      %s159 = sphi 0, %s158
      %s173 = sphi 0, %s159
      %s177 = sphi 0, %s177
      %s179 = sphi 0, %s177
      %s180 = sphi 0, %s179
      %s194 = sphi 0, %s180
      %s198 = sphi 0, %s198
      %s200 = sphi 0, %s198
      %s201 = sphi 0, %s200
      %s215 = sphi 0, %s201
      %s219 = sphi 0, %s219
      %s221 = sphi 0, %s219
      %s222 = sphi 0, %s221
      %s236 = sphi 0, %s222
      %s240 = sphi 0, %s240
      %s242 = sphi 0, %s240
      %s243 = sphi 0, %s242
      %s257 = sphi 0, %s243
      %s265 = sphi 0, %s267
      %s268 = sphi 0, %s265
      %s269 = sphi 0, %s268
      %s285 = sphi 0, %s269
    $region4: #{tpu_custom_call.1} parent=1 // loop_header_branch
      %31 = sbr.rel (%p29) target = $region8
    $region5: #{tpu_custom_call.1} parent=1 // loop_body
      %s33 = ssub.s32 %s28, 1
      %s34 = ssub.s32 %s28, 2
      %s41 = sadd.s32 1, %s36
      %p42 = scmp.ge.s32.totalorder %s41, 1
      %s43 = scalar_select %p42, 0, %s41
      %s44 = sadd.s32 1, %s35
      %s45 = scalar_select %p42, %s44, %s35
      %p46 = scmp.ge.s32.totalorder %s45, 2
      %s47 = scalar_select %p46, 0, %s45
      %s48 = ssub.s32 %s35, %s47
      %s49 = ssub.s32 %s36, %s43
      %s50 = sor.u32 %s48, %s49
      %p51 = scmp.eq.s32.totalorder %s50, 0
      %s53 = sadd.s32 %s52, 1
      %s54 = scalar_select %p51, %s52, %s53
      %p57 = pneg %p51
      %p58 = scmp.eq.s32.totalorder %s28, 1
      %p59 = por %p57, %p58
      %p60 = scmp.ne.s32.totalorder %s52, %s55
      %p61 = scmp.eq.s32.totalorder %s28, 0
      %p62 = por %p60, %p61
      %p63 = scmp.ne.s32.totalorder %s52, %s55
      %p64 = scmp.eq.s32.totalorder %s33, 1
      %p65 = por %p63, %p64
      %p66 = scmp.ne.s32.totalorder %s55, %s56
      %p67 = scmp.eq.s32.totalorder %s33, 0
      %p68 = por %p66, %p67
      %p69 = scmp.ne.s32.totalorder %s55, %s56
      %p70 = scmp.eq.s32.totalorder %s34, 1
      %p71 = por %p69, %p70
      %p73 = scmp.ne.s32.totalorder %s56, %s72
      %p74 = scmp.eq.s32.totalorder %s34, 0
      %p75 = por %p73, %p74
      %s76 = ssub.s32 %s35, %s47
      %p77 = scmp.eq.s32.totalorder %s76, 0
      %s79 = sadd.s32 %s78, 1
      %s80 = scalar_select %p77, %s78, %s79
      %p83 = pneg %p77
      %p84 = scmp.eq.s32.totalorder %s28, 1
      %p85 = por %p83, %p84
      %p86 = scmp.ne.s32.totalorder %s78, %s81
      %p87 = scmp.eq.s32.totalorder %s28, 0
      %p88 = por %p86, %p87
      %p89 = scmp.ne.s32.totalorder %s78, %s81
      %p90 = scmp.eq.s32.totalorder %s33, 1
      %p91 = por %p89, %p90
      %p92 = scmp.ne.s32.totalorder %s81, %s82
      %p93 = scmp.eq.s32.totalorder %s33, 0
      %p94 = por %p92, %p93
      %p95 = scmp.ne.s32.totalorder %s81, %s82
      %p96 = scmp.eq.s32.totalorder %s34, 1
      %p97 = por %p95, %p96
      %p99 = scmp.ne.s32.totalorder %s82, %s98
      %p100 = scmp.eq.s32.totalorder %s34, 0
      %p101 = por %p99, %p100
      %s102 = ssub.s32 %s35, %s47
      %p103 = scmp.eq.s32.totalorder %s102, 0
      %s105 = sadd.s32 %s104, 1
      %s106 = scalar_select %p103, %s104, %s105
      %p109 = pneg %p103
      %p110 = scmp.eq.s32.totalorder %s28, 1
      %p111 = por %p109, %p110
      %p112 = scmp.ne.s32.totalorder %s104, %s107
      %p113 = scmp.eq.s32.totalorder %s28, 0
      %p114 = por %p112, %p113
      %p115 = scmp.ne.s32.totalorder %s104, %s107
      %p116 = scmp.eq.s32.totalorder %s33, 1
      %p117 = por %p115, %p116
      %p118 = scmp.ne.s32.totalorder %s107, %s108
      %p119 = scmp.eq.s32.totalorder %s33, 0
      %p120 = por %p118, %p119
      %p121 = scmp.ne.s32.totalorder %s107, %s108
      %p122 = scmp.eq.s32.totalorder %s34, 1
      %p123 = por %p121, %p122
      %p125 = scmp.ne.s32.totalorder %s108, %s124
      %p126 = scmp.eq.s32.totalorder %s34, 0
      %p127 = por %p125, %p126
      %s128 = ssub.s32 %s35, %s47
      %s129 = ssub.s32 %s36, %s43
      %s130 = sor.u32 %s128, %s129
      %p131 = scmp.eq.s32.totalorder %s130, 0
      %s133 = sadd.s32 %s132, 1
      %s134 = scalar_select %p131, %s132, %s133
      %p137 = pneg %p131
      %p138 = scmp.eq.s32.totalorder %s28, 1
      %p139 = por %p137, %p138
      %p140 = scmp.ne.s32.totalorder %s132, %s135
      %p141 = scmp.eq.s32.totalorder %s28, 0
      %p142 = por %p140, %p141
      %p143 = scmp.ne.s32.totalorder %s132, %s135
      %p144 = scmp.eq.s32.totalorder %s33, 1
      %p145 = por %p143, %p144
      %p146 = scmp.ne.s32.totalorder %s135, %s136
      %p147 = scmp.eq.s32.totalorder %s33, 0
      %p148 = por %p146, %p147
      %p149 = scmp.ne.s32.totalorder %s135, %s136
      %p150 = scmp.eq.s32.totalorder %s34, 1
      %p151 = por %p149, %p150
      %p153 = scmp.ne.s32.totalorder %s136, %s152
      %p154 = scmp.eq.s32.totalorder %s34, 0
      %p155 = por %p153, %p154
      %s157 = sadd.s32 %s156, 1
      %p160 = scmp.eq.s32.totalorder %s28, 1
      %p161 = scmp.ne.s32.totalorder %s156, %s158
      %p162 = scmp.eq.s32.totalorder %s28, 0
      %p163 = por %p161, %p162
      %p164 = scmp.ne.s32.totalorder %s156, %s158
      %p165 = scmp.eq.s32.totalorder %s33, 1
      %p166 = por %p164, %p165
      %p167 = scmp.ne.s32.totalorder %s158, %s159
      %p168 = scmp.eq.s32.totalorder %s33, 0
      %p169 = por %p167, %p168
      %p170 = scmp.ne.s32.totalorder %s158, %s159
      %p171 = scmp.eq.s32.totalorder %s34, 1
      %p172 = por %p170, %p171
      %p174 = scmp.ne.s32.totalorder %s159, %s173
      %p175 = scmp.eq.s32.totalorder %s34, 0
      %p176 = por %p174, %p175
      %s178 = sadd.s32 %s177, 1
      %p181 = scmp.eq.s32.totalorder %s28, 1
      %p182 = scmp.ne.s32.totalorder %s177, %s179
      %p183 = scmp.eq.s32.totalorder %s28, 0
      %p184 = por %p182, %p183
      %p185 = scmp.ne.s32.totalorder %s177, %s179
      %p186 = scmp.eq.s32.totalorder %s33, 1
      %p187 = por %p185, %p186
      %p188 = scmp.ne.s32.totalorder %s179, %s180
      %p189 = scmp.eq.s32.totalorder %s33, 0
      %p190 = por %p188, %p189
      %p191 = scmp.ne.s32.totalorder %s179, %s180
      %p192 = scmp.eq.s32.totalorder %s34, 1
      %p193 = por %p191, %p192
      %p195 = scmp.ne.s32.totalorder %s180, %s194
      %p196 = scmp.eq.s32.totalorder %s34, 0
      %p197 = por %p195, %p196
      %s199 = sadd.s32 %s198, 1
      %p202 = scmp.eq.s32.totalorder %s28, 1
      %p203 = scmp.ne.s32.totalorder %s198, %s200
      %p204 = scmp.eq.s32.totalorder %s28, 0
      %p205 = por %p203, %p204
      %p206 = scmp.ne.s32.totalorder %s198, %s200
      %p207 = scmp.eq.s32.totalorder %s33, 1
      %p208 = por %p206, %p207
      %p209 = scmp.ne.s32.totalorder %s200, %s201
      %p210 = scmp.eq.s32.totalorder %s33, 0
      %p211 = por %p209, %p210
      %p212 = scmp.ne.s32.totalorder %s200, %s201
      %p213 = scmp.eq.s32.totalorder %s34, 1
      %p214 = por %p212, %p213
      %p216 = scmp.ne.s32.totalorder %s201, %s215
      %p217 = scmp.eq.s32.totalorder %s34, 0
      %p218 = por %p216, %p217
      %s220 = sadd.s32 %s219, 1
      %p223 = scmp.eq.s32.totalorder %s28, 1
      %p224 = scmp.ne.s32.totalorder %s219, %s221
      %p225 = scmp.eq.s32.totalorder %s28, 0
      %p226 = por %p224, %p225
      %p227 = scmp.ne.s32.totalorder %s219, %s221
      %p228 = scmp.eq.s32.totalorder %s33, 1
      %p229 = por %p227, %p228
      %p230 = scmp.ne.s32.totalorder %s221, %s222
      %p231 = scmp.eq.s32.totalorder %s33, 0
      %p232 = por %p230, %p231
      %p233 = scmp.ne.s32.totalorder %s221, %s222
      %p234 = scmp.eq.s32.totalorder %s34, 1
      %p235 = por %p233, %p234
      %p237 = scmp.ne.s32.totalorder %s222, %s236
      %p238 = scmp.eq.s32.totalorder %s34, 0
      %p239 = por %p237, %p238
      %s241 = sadd.s32 %s240, 1
      %p244 = scmp.eq.s32.totalorder %s28, 1
      %p245 = scmp.ne.s32.totalorder %s240, %s242
      %p246 = scmp.eq.s32.totalorder %s28, 0
      %p247 = por %p245, %p246
      %p248 = scmp.ne.s32.totalorder %s240, %s242
      %p249 = scmp.eq.s32.totalorder %s33, 1
      %p250 = por %p248, %p249
      %p251 = scmp.ne.s32.totalorder %s242, %s243
      %p252 = scmp.eq.s32.totalorder %s33, 0
      %p253 = por %p251, %p252
      %p254 = scmp.ne.s32.totalorder %s242, %s243
      %p255 = scmp.eq.s32.totalorder %s34, 1
      %p256 = por %p254, %p255
      %p258 = scmp.ne.s32.totalorder %s243, %s257
      %p259 = scmp.eq.s32.totalorder %s34, 0
      %p260 = por %p258, %p259
      %s261 = ssub.s32 %s35, %s47
      %s262 = ssub.s32 %s36, %s43
      %s263 = sor.u32 %s261, %s262
      %p264 = scmp.eq.s32.totalorder %s263, 0
      %s266 = sadd.s32 %s265, 1
      %s267 = scalar_select %p264, %s265, %s266
      %p270 = pneg %p264
      %p271 = scmp.eq.s32.totalorder %s28, 1
      %p272 = por %p270, %p271
      %p273 = scmp.ne.s32.totalorder %s265, %s268
      %p274 = scmp.eq.s32.totalorder %s28, 0
      %p275 = por %p273, %p274
      %p276 = scmp.ne.s32.totalorder %s265, %s268
      %p277 = scmp.eq.s32.totalorder %s33, 1
      %p278 = por %p276, %p277
      %p279 = scmp.ne.s32.totalorder %s268, %s269
      %p280 = scmp.eq.s32.totalorder %s33, 0
      %p281 = por %p279, %p280
      %p282 = scmp.ne.s32.totalorder %s268, %s269
      %p283 = scmp.eq.s32.totalorder %s34, 1
      %p284 = por %p282, %p283
      %p286 = scmp.ne.s32.totalorder %s269, %s285
      %p287 = scmp.eq.s32.totalorder %s34, 0
      %p288 = por %p286, %p287
      %p289 = scmp.le.s32.totalorder 1, %s28
      %p290 = scmp.lt.s32.totalorder %s28, 3
      %p291 = pnand %p289, %p290
      %p292 = pneg %p291
      // Predicated region
      $region9: #{tpu_custom_call.1} parent=5 // pred_check
        _
      $region10: #{tpu_custom_call.1} parent=5 // pred_check_branch
        %294 = sbr.rel (%p291) target = $region12
      $region11: #{tpu_custom_call.1} parent=5 // pred_region
        %s295 = ssub.s32 %s28, 1
        // Predicated region
        $region13: #{tpu_custom_call.1} parent=11 // pred_check
          %p296 = pneg %p169
        $region14: #{tpu_custom_call.1} parent=11 // pred_check_branch
          %298 = sbr.rel (%p296) target = $region16
        $region15: #{tpu_custom_call.1} parent=11 // pred_region
          %s300 = ssub.s32 256, 256
          %301 = vsyncadd [#allocation11], %s300
          %s302 = sshll.u32 [#allocation12], 4
          %s303 = int_to_ptr.vmem [resolvable:$true] %s302
          %308 = dma.hbm_to_vmem [thread:$0]  %s4, 256, %s303, [#allocation11], 64, 64, 4
        $region16: #{tpu_custom_call.1} parent=11 // pred_fallthru
          _
        // Predicated region
        $region17: #{tpu_custom_call.1} parent=11 // pred_check
          %p309 = pneg %p190
        $region18: #{tpu_custom_call.1} parent=11 // pred_check_branch
          %311 = sbr.rel (%p309) target = $region20
        $region19: #{tpu_custom_call.1} parent=11 // pred_region
          _
        $region20: #{tpu_custom_call.1} parent=11 // pred_fallthru
          _
        // Predicated region
        $region21: #{tpu_custom_call.1} parent=11 // pred_check
          %p312 = pneg %p211
        $region22: #{tpu_custom_call.1} parent=11 // pred_check_branch
          %314 = sbr.rel (%p312) target = $region24
        $region23: #{tpu_custom_call.1} parent=11 // pred_region
          %s316 = ssub.s32 256, 256
          %317 = vsyncadd [#allocation14], %s316
          %s318 = sshll.u32 [#allocation13], 4
          %s319 = int_to_ptr.vmem [resolvable:$true] %s318
          %324 = dma.hbm_to_vmem [thread:$0]  %s6, 256, %s319, [#allocation14], 64, 64, 4
        $region24: #{tpu_custom_call.1} parent=11 // pred_fallthru
          _
        // Predicated region
        $region25: #{tpu_custom_call.1} parent=11 // pred_check
          %p325 = pneg %p232
        $region26: #{tpu_custom_call.1} parent=11 // pred_check_branch
          %327 = sbr.rel (%p325) target = $region28
        $region27: #{tpu_custom_call.1} parent=11 // pred_region
          %s329 = ssub.s32 256, 256
          %330 = vsyncadd [#allocation14], %s329
          %s331 = sshll.u32 [#allocation15], 4
          %s332 = int_to_ptr.vmem [resolvable:$true] %s331
          %337 = dma.hbm_to_vmem [thread:$0]  %s7, 256, %s332, [#allocation14], 64, 64, 4
        $region28: #{tpu_custom_call.1} parent=11 // pred_fallthru
          _
        // Predicated region
        $region29: #{tpu_custom_call.1} parent=11 // pred_check
          %p338 = pneg %p253
        $region30: #{tpu_custom_call.1} parent=11 // pred_check_branch
          %340 = sbr.rel (%p338) target = $region32
        $region31: #{tpu_custom_call.1} parent=11 // pred_region
          _
        $region32: #{tpu_custom_call.1} parent=11 // pred_fallthru
          _
      $region12: #{tpu_custom_call.1} parent=5 // pred_fallthru
        _
      %p341 = scmp.lt.s32.totalorder %s28, 2
      // Predicated region
      $region33: #{tpu_custom_call.1} parent=5 // pred_check
        %p342 = pneg %p341
      $region34: #{tpu_custom_call.1} parent=5 // pred_check_branch
        %344 = sbr.rel (%p342) target = $region36
      $region35: #{tpu_custom_call.1} parent=5 // pred_region
        // Predicated region
        $region37: #{tpu_custom_call.1} parent=35 // pred_check
          %p345 = pneg %p62
        $region38: #{tpu_custom_call.1} parent=35 // pred_check_branch
          %347 = sbr.rel (%p345) target = $region40
        $region39: #{tpu_custom_call.1} parent=35 // pred_region
          %s348 = sand.u32 %s52, 1
          %s349 = scalar_lea.sflag [#allocation5], %s348
          %s350 = sand.u32 %s52, 1
          %s351 = smul.addr %s350, 4
          %s352 = scalar_lea.vmem [#allocation4], %s351
          %s354 = ssub.s32 64, 64
          %355 = vsyncadd %s349, %s354
          %s356 = sadd.s32 %s36, %s35
          %s357 = smul.addr %s356, 64
          %s358 = scalar_lea.hbm %s0, %s357
          %s360 = sshll.u32 %s352, 4
          %s361 = int_to_ptr.vmem [resolvable:$true] %s360
          %363 = dma.hbm_to_vmem [thread:$0]  %s358, 64, %s361, %s349
        $region40: #{tpu_custom_call.1} parent=35 // pred_fallthru
          _
        // Predicated region
        $region41: #{tpu_custom_call.1} parent=35 // pred_check
          %p364 = pneg %p88
        $region42: #{tpu_custom_call.1} parent=35 // pred_check_branch
          %366 = sbr.rel (%p364) target = $region44
        $region43: #{tpu_custom_call.1} parent=35 // pred_region
          %s367 = sand.u32 %s28, 1
          %s368 = scalar_lea.sflag [#allocation8], %s367
          %s369 = sand.u32 %s78, 1
          %s370 = smul.addr %s369, 4
          %s371 = scalar_lea.vmem [#allocation7], %s370
          %s373 = ssub.s32 64, 64
          %374 = vsyncadd %s368, %s373
          %s375 = smul.addr %s35, 64
          %s376 = scalar_lea.hbm %s1, %s375
          %s378 = sshll.u32 %s371, 4
          %s379 = int_to_ptr.vmem [resolvable:$true] %s378
          %381 = dma.hbm_to_vmem [thread:$0]  %s376, 64, %s379, %s368
        $region44: #{tpu_custom_call.1} parent=35 // pred_fallthru
          _
        // Predicated region
        $region45: #{tpu_custom_call.1} parent=35 // pred_check
          %p382 = pneg %p114
        $region46: #{tpu_custom_call.1} parent=35 // pred_check_branch
          %384 = sbr.rel (%p382) target = $region48
        $region47: #{tpu_custom_call.1} parent=35 // pred_region
          %s385 = sand.u32 %s28, 1
          %s386 = scalar_lea.sflag [#allocation8], %s385
          %s387 = sand.u32 %s104, 1
          %s388 = smul.addr %s387, 4
          %s389 = scalar_lea.vmem [#allocation9], %s388
          %s391 = ssub.s32 64, 64
          %392 = vsyncadd %s386, %s391
          %s393 = smul.addr %s35, 64
          %s394 = scalar_lea.hbm %s2, %s393
          %s396 = sshll.u32 %s389, 4
          %s397 = int_to_ptr.vmem [resolvable:$true] %s396
          %399 = dma.hbm_to_vmem [thread:$0]  %s394, 64, %s397, %s386
        $region48: #{tpu_custom_call.1} parent=35 // pred_fallthru
          _
        // Predicated region
        $region49: #{tpu_custom_call.1} parent=35 // pred_check
          %p400 = pneg %p142
        $region50: #{tpu_custom_call.1} parent=35 // pred_check_branch
          %402 = sbr.rel (%p400) target = $region52
        $region51: #{tpu_custom_call.1} parent=35 // pred_region
          %s403 = sand.u32 %s28, 1
          %s404 = scalar_lea.sflag [#allocation11], %s403
          %s405 = sand.u32 %s132, 1
          %s406 = smul.addr %s405, 8
          %s407 = scalar_lea.vmem [#allocation10], %s406
          %s409 = ssub.s32 128, 128
          %410 = vsyncadd %s404, %s409
          %s411 = sadd.s32 %s36, %s35
          %s412 = smul.addr %s411, 128
          %s413 = scalar_lea.hbm %s3, %s412
          %s415 = sshll.u32 %s407, 4
          %s416 = int_to_ptr.vmem [resolvable:$true] %s415
          %418 = dma.hbm_to_vmem [thread:$0]  %s413, 128, %s416, %s404
        $region52: #{tpu_custom_call.1} parent=35 // pred_fallthru
          _
      $region36: #{tpu_custom_call.1} parent=5 // pred_fallthru
        _
      %p419 = scmp.le.s32.totalorder 1, %s28
      %p420 = scmp.lt.s32.totalorder %s28, 3
      %p421 = pnand %p419, %p420
      %p422 = pneg %p421
      // Predicated region
      $region53: #{tpu_custom_call.1} parent=5 // pred_check
        _
      $region54: #{tpu_custom_call.1} parent=5 // pred_check_branch
        %424 = sbr.rel (%p421) target = $region56
      $region55: #{tpu_custom_call.1} parent=5 // pred_region
        %s425 = ssub.s32 %s28, 1
        %s426 = sand.u32 %s55, 1
        %s427 = scalar_lea.sflag [#allocation5], %s426
        %s428 = sand.u32 %s55, 1
        %s429 = smul.addr %s428, 4
        %s430 = scalar_lea.vmem [#allocation4], %s429
        // Predicated region
        $region57: #{tpu_custom_call.1} parent=55 // pred_check
          %p431 = pneg %p68
        $region58: #{tpu_custom_call.1} parent=55 // pred_check_branch
          %433 = sbr.rel (%p431) target = $region60
        $region59: #{tpu_custom_call.1} parent=55 // pred_region
          %434 = dma.done %s427, 64
        $region60: #{tpu_custom_call.1} parent=55 // pred_fallthru
          _
        %s435 = sand.u32 %s33, 1
        %s436 = scalar_lea.sflag [#allocation8], %s435
        %s437 = sand.u32 %s81, 1
        %s438 = smul.addr %s437, 4
        %s439 = scalar_lea.vmem [#allocation7], %s438
        // Predicated region
        $region61: #{tpu_custom_call.1} parent=55 // pred_check
          %p440 = pneg %p94
        $region62: #{tpu_custom_call.1} parent=55 // pred_check_branch
          %442 = sbr.rel (%p440) target = $region64
        $region63: #{tpu_custom_call.1} parent=55 // pred_region
          %443 = dma.done %s436, 64
        $region64: #{tpu_custom_call.1} parent=55 // pred_fallthru
          _
        %s444 = sand.u32 %s33, 1
        %s445 = scalar_lea.sflag [#allocation8], %s444
        %s446 = sand.u32 %s107, 1
        %s447 = smul.addr %s446, 4
        %s448 = scalar_lea.vmem [#allocation9], %s447
        // Predicated region
        $region65: #{tpu_custom_call.1} parent=55 // pred_check
          %p449 = pneg %p120
        $region66: #{tpu_custom_call.1} parent=55 // pred_check_branch
          %451 = sbr.rel (%p449) target = $region68
        $region67: #{tpu_custom_call.1} parent=55 // pred_region
          %452 = dma.done %s445, 64
        $region68: #{tpu_custom_call.1} parent=55 // pred_fallthru
          _
        %s453 = sand.u32 %s33, 1
        %s454 = scalar_lea.sflag [#allocation11], %s453
        %s455 = sand.u32 %s135, 1
        %s456 = smul.addr %s455, 8
        %s457 = scalar_lea.vmem [#allocation10], %s456
        // Predicated region
        $region69: #{tpu_custom_call.1} parent=55 // pred_check
          %p458 = pneg %p148
        $region70: #{tpu_custom_call.1} parent=55 // pred_check_branch
          %460 = sbr.rel (%p458) target = $region72
        $region71: #{tpu_custom_call.1} parent=55 // pred_region
          %461 = dma.done %s454, 128
        $region72: #{tpu_custom_call.1} parent=55 // pred_fallthru
          _
        // Predicated region
        $region73: #{tpu_custom_call.1} parent=55 // pred_check
          %p462 = pneg %p169
        $region74: #{tpu_custom_call.1} parent=55 // pred_check_branch
          %464 = sbr.rel (%p462) target = $region76
        $region75: #{tpu_custom_call.1} parent=55 // pred_region
          %465 = dma.done [#allocation11], 256
        $region76: #{tpu_custom_call.1} parent=55 // pred_fallthru
          _
        // Predicated region
        $region77: #{tpu_custom_call.1} parent=55 // pred_check
          %p466 = pneg %p211
        $region78: #{tpu_custom_call.1} parent=55 // pred_check_branch
          %468 = sbr.rel (%p466) target = $region80
        $region79: #{tpu_custom_call.1} parent=55 // pred_region
          %469 = dma.done [#allocation14], 256
        $region80: #{tpu_custom_call.1} parent=55 // pred_fallthru
          _
        // Predicated region
        $region81: #{tpu_custom_call.1} parent=55 // pred_check
          %p470 = pneg %p232
        $region82: #{tpu_custom_call.1} parent=55 // pred_check_branch
          %472 = sbr.rel (%p470) target = $region84
        $region83: #{tpu_custom_call.1} parent=55 // pred_region
          %473 = dma.done [#allocation14], 256
        $region84: #{tpu_custom_call.1} parent=55 // pred_fallthru
          _
        %s474 = sand.u32 %s55, 1
        %s475 = scalar_lea.sflag [#allocation5], %s474
        %s476 = sand.u32 %s55, 1
        %s477 = smul.addr %s476, 4
        %s478 = scalar_lea.vmem [#allocation4], %s477
        %p479 = pneg %p68
        %p480 = pneg %p65
        %s481 = sand.u32 %s33, 1
        %s482 = scalar_lea.sflag [#allocation8], %s481
        %s483 = sand.u32 %s81, 1
        %s484 = smul.addr %s483, 4
        %s485 = scalar_lea.vmem [#allocation7], %s484
        %p486 = pneg %p94
        %p487 = pneg %p91
        %s488 = sand.u32 %s33, 1
        %s489 = scalar_lea.sflag [#allocation8], %s488
        %s490 = sand.u32 %s107, 1
        %s491 = smul.addr %s490, 4
        %s492 = scalar_lea.vmem [#allocation9], %s491
        %p493 = pneg %p120
        %p494 = pneg %p117
        %s495 = sand.u32 %s33, 1
        %s496 = scalar_lea.sflag [#allocation11], %s495
        %s497 = sand.u32 %s135, 1
        %s498 = smul.addr %s497, 8
        %s499 = scalar_lea.vmem [#allocation10], %s498
        %p500 = pneg %p148
        %p501 = pneg %p145
        %p502 = pneg %p169
        %p503 = pneg %p166
        %p504 = pneg %p190
        %p505 = pneg %p187
        %p506 = pneg %p211
        %p507 = pneg %p208
        %p508 = pneg %p232
        %p509 = pneg %p229
        %p510 = pneg %p253
        %p511 = pneg %p250
        %p512 = pneg %p281
        %p513 = pneg %p278
        %s514 = sand.u32 %s268, 1
        %s515 = scalar_lea.sflag [#allocation6], %s514
        %s516 = sand.u32 %s268, 1
        %s517 = smul.addr %s516, 8
        %s518 = scalar_lea.vmem [#allocation16], %s517
        %p520 = scmp.eq.s32.totalorder %s38, 0
        // Predicated region
        $region85: #{tpu_custom_call.1} parent=55 // pred_check
          %p521 = pneg %p520
        $region86: #{tpu_custom_call.1} parent=55 // pred_check_branch
          %523 = sbr.rel (%p521) target = $region88
        $region87: #{tpu_custom_call.1} parent=55 // pred_region
          %v524 = vld [vmem:[%s439] sm:$0xf]
          %v525 = vld [vmem:[%s5] sm:$0xf]
          %v526 = vld [vmem:[%s5 + $0x4] sm:$0xf]
          %v527 = vld [vmem:[%s5 + $0x8] sm:$0xf]
          %v528 = vld [vmem:[%s5 + $0xc] sm:$0xf]
          %v533 = vunpack.c.l.b16 %v525
          %v534 = vunpack.c.l.b16 %v526
          %v535 = vunpack.c.l.b16 %v527
          %v536 = vunpack.c.l.b16 %v528
          %v537 = vpack.c.b16 %v534, %v533
          %v538 = vpack.c.b16 %v536, %v535
          %vm541 = vcmask 261120
          %v543 = vsel %vm541, %v524, 0
          %545 = vmatprep.subr.bf16.mxu0 0
          %546 = vmatpush1.bf16.msra.mxu0 %v537
          %547 = vmatprep.subr.bf16.mxu0 0
          %548 = vmatpush1.bf16.msra.mxu0 %v538
          %549 = vmatprep.subr.bf16.mxu0 0
          %550 = vmatpush1.bf16.msra.mxu0 0
          %551 = vmatprep.subr.bf16.mxu0 0
          %552 = vmatpush1.bf16.msra.mxu0 0
          %553 = vmatprep.subr.bf16.mxu0 0
          %554 = vmatpush1.bf16.msra.mxu0 0
          %555 = vmatprep.subr.bf16.mxu0 0
          %556 = vmatpush1.bf16.msra.mxu0 0
          %557 = vmatprep.subr.bf16.mxu0 0
          %558 = vmatpush1.bf16.msra.mxu0 0
          %559 = vmatprep.subr.bf16.mxu0 0
          %560 = vmatpush1.bf16.msra.mxu0 0
          %561 = vmatprep.subr.bf16.mxu0 0
          %562 = vmatpush1.bf16.msra.mxu0 0
          %563 = vmatprep.subr.bf16.mxu0 0
          %564 = vmatpush1.bf16.msra.mxu0 0
          %565 = vmatprep.subr.bf16.mxu0 0
          %566 = vmatpush1.bf16.msra.mxu0 0
          %567 = vmatprep.subr.bf16.mxu0 0
          %568 = vmatpush1.bf16.msra.mxu0 0
          %569 = vmatprep.subr.bf16.mxu0 0
          %570 = vmatpush1.bf16.msra.mxu0 0
          %571 = vmatprep.subr.bf16.mxu0 0
          %572 = vmatpush1.bf16.msra.mxu0 0
          %573 = vmatprep.subr.bf16.mxu0 0
          %574 = vmatpush1.bf16.msra.mxu0 0
          %575 = vmatprep.subr.bf16.mxu0 0
          %576 = vmatpush1.bf16.msra.mxu0 0
          %577 = vmatprep.mubr.bf16.mxu0 0
          %578 = vmatmul.mubr.bf16.gmra.mrb[0].mxu0 %v543
          %v579 = vpop.f32.mrb[0].mxu0
          %v580 = vadd.f32 0.0, %v579
          %v581 = vpop.f32.mrb[0].mxu0
          %v582 = vpop.f32.mrb[0].mxu0
          %v583 = vpop.f32.mrb[0].mxu0
          %584 = vdwg.mxu0
          %v585 = vpack.c.bf16 %v580, %v580
          %vm586 = vcmask 257024
          %587 = vst.msk [vmem:[#allocation2] sm:$0xf] %vm586, %v585
          %v588 = vld [vmem:[%s448] sm:$0xf]
          %v589 = vld [vmem:[#allocation13] sm:$0xf]
          %v590 = vld [vmem:[#allocation13 + $0x4] sm:$0xf]
          %v591 = vld [vmem:[#allocation13 + $0x8] sm:$0xf]
          %v592 = vld [vmem:[#allocation13 + $0xc] sm:$0xf]
          %v597 = vunpack.c.l.b16 %v589
          %v598 = vunpack.c.l.b16 %v590
          %v599 = vunpack.c.l.b16 %v591
          %v600 = vunpack.c.l.b16 %v592
          %v601 = vpack.c.b16 %v598, %v597
          %v602 = vpack.c.b16 %v600, %v599
          %v606 = vsel %vm541, %v588, 0
          %608 = vmatprep.subr.bf16.mxu0 0
          %609 = vmatpush1.bf16.msra.mxu0 %v601
          %610 = vmatprep.subr.bf16.mxu0 0
          %611 = vmatpush1.bf16.msra.mxu0 %v602
          %612 = vmatprep.subr.bf16.mxu0 0
          %613 = vmatpush1.bf16.msra.mxu0 0
          %614 = vmatprep.subr.bf16.mxu0 0
          %615 = vmatpush1.bf16.msra.mxu0 0
          %616 = vmatprep.subr.bf16.mxu0 0
          %617 = vmatpush1.bf16.msra.mxu0 0
          %618 = vmatprep.subr.bf16.mxu0 0
          %619 = vmatpush1.bf16.msra.mxu0 0
          %620 = vmatprep.subr.bf16.mxu0 0
          %621 = vmatpush1.bf16.msra.mxu0 0
          %622 = vmatprep.subr.bf16.mxu0 0
          %623 = vmatpush1.bf16.msra.mxu0 0
          %624 = vmatprep.subr.bf16.mxu0 0
          %625 = vmatpush1.bf16.msra.mxu0 0
          %626 = vmatprep.subr.bf16.mxu0 0
          %627 = vmatpush1.bf16.msra.mxu0 0
          %628 = vmatprep.subr.bf16.mxu0 0
          %629 = vmatpush1.bf16.msra.mxu0 0
          %630 = vmatprep.subr.bf16.mxu0 0
          %631 = vmatpush1.bf16.msra.mxu0 0
          %632 = vmatprep.subr.bf16.mxu0 0
          %633 = vmatpush1.bf16.msra.mxu0 0
          %634 = vmatprep.subr.bf16.mxu0 0
          %635 = vmatpush1.bf16.msra.mxu0 0
          %636 = vmatprep.subr.bf16.mxu0 0
          %637 = vmatpush1.bf16.msra.mxu0 0
          %638 = vmatprep.subr.bf16.mxu0 0
          %639 = vmatpush1.bf16.msra.mxu0 0
          %640 = vmatprep.mubr.bf16.mxu0 0
          %641 = vmatmul.mubr.bf16.gmra.mrb[0].mxu0 %v606
          %v642 = vpop.f32.mrb[0].mxu0
          %v643 = vadd.f32 0.0, %v642
          %v644 = vpop.f32.mrb[0].mxu0
          %v645 = vpop.f32.mrb[0].mxu0
          %v646 = vpop.f32.mrb[0].mxu0
          %647 = vdwg.mxu0
          %v648 = vpack.c.bf16 %v643, %v643
          %649 = vst.msk [vmem:[#allocation3] sm:$0xf] %vm586, %v648
        $region88: #{tpu_custom_call.1} parent=55 // pred_fallthru
          _
        %v650 = vld [vmem:[%s430] sm:$0xf]
        %v651 = vld [vmem:[#allocation12] sm:$0xf]
        %v652 = vld [vmem:[#allocation12 + $0x4] sm:$0xf]
        %v653 = vld [vmem:[#allocation12 + $0x8] sm:$0xf]
        %v654 = vld [vmem:[#allocation12 + $0xc] sm:$0xf]
        %v659 = vunpack.c.l.b16 %v651
        %v660 = vunpack.c.l.b16 %v652
        %v661 = vunpack.c.l.b16 %v653
        %v662 = vunpack.c.l.b16 %v654
        %v663 = vpack.c.b16 %v660, %v659
        %v664 = vpack.c.b16 %v662, %v661
        %vm667 = vcmask 261120
        %v669 = vsel %vm667, %v650, 0
        %671 = vmatprep.subr.bf16.mxu0 0
        %672 = vmatpush1.bf16.msra.mxu0 %v663
        %673 = vmatprep.subr.bf16.mxu0 0
        %674 = vmatpush1.bf16.msra.mxu0 %v664
        %675 = vmatprep.subr.bf16.mxu0 0
        %676 = vmatpush1.bf16.msra.mxu0 0
        %677 = vmatprep.subr.bf16.mxu0 0
        %678 = vmatpush1.bf16.msra.mxu0 0
        %679 = vmatprep.subr.bf16.mxu0 0
        %680 = vmatpush1.bf16.msra.mxu0 0
        %681 = vmatprep.subr.bf16.mxu0 0
        %682 = vmatpush1.bf16.msra.mxu0 0
        %683 = vmatprep.subr.bf16.mxu0 0
        %684 = vmatpush1.bf16.msra.mxu0 0
        %685 = vmatprep.subr.bf16.mxu0 0
        %686 = vmatpush1.bf16.msra.mxu0 0
        %687 = vmatprep.subr.bf16.mxu0 0
        %688 = vmatpush1.bf16.msra.mxu0 0
        %689 = vmatprep.subr.bf16.mxu0 0
        %690 = vmatpush1.bf16.msra.mxu0 0
        %691 = vmatprep.subr.bf16.mxu0 0
        %692 = vmatpush1.bf16.msra.mxu0 0
        %693 = vmatprep.subr.bf16.mxu0 0
        %694 = vmatpush1.bf16.msra.mxu0 0
        %695 = vmatprep.subr.bf16.mxu0 0
        %696 = vmatpush1.bf16.msra.mxu0 0
        %697 = vmatprep.subr.bf16.mxu0 0
        %698 = vmatpush1.bf16.msra.mxu0 0
        %699 = vmatprep.subr.bf16.mxu0 0
        %700 = vmatpush1.bf16.msra.mxu0 0
        %701 = vmatprep.subr.bf16.mxu0 0
        %702 = vmatpush1.bf16.msra.mxu0 0
        %703 = vmatprep.mubr.bf16.mxu0 0
        %704 = vmatmul.mubr.bf16.gmra.mrb[0].mxu0 %v669
        %v705 = vpop.f32.mrb[0].mxu0
        %v706 = vadd.f32 0.0, %v705
        %v707 = vpop.f32.mrb[0].mxu0
        %v708 = vpop.f32.mrb[0].mxu0
        %v709 = vpop.f32.mrb[0].mxu0
        %710 = vdwg.mxu0
        %v711 = vmul.f32 %v706, 0.17677669
        %v712 = vld [vmem:[%s457] sm:$0xff]
        %vm713 = vcmp.eq.f32.partialorder %v712, 0.0
        %v714 = vsel %vm713, -1e+20, 0.0
        %v715 = vld [vmem:[#allocation2] sm:$0xf]
        %v716 = vld [vmem:[#allocation3] sm:$0xf]
        %v717 = vpack.c.bf16 %v711, %v711
        %vm718 = vcmask 64512
        %v720 = vsel %vm718, %v717, 0
        %v723 = vsel %vm718, %v715, 0
        %725 = vmatprep.subr.bf16.mxu0 0
        %726 = vmatpush1.bf16.xpose.msra.mxu0 %v723
        %727 = vmatprep.subr.bf16.mxu0 0
        %728 = vmatpush1.bf16.xpose.msra.mxu0 0
        %729 = vmatprep.subr.bf16.mxu0 0
        %730 = vmatpush1.bf16.xpose.msra.mxu0 0
        %731 = vmatprep.subr.bf16.mxu0 0
        %732 = vmatpush1.bf16.xpose.msra.mxu0 0
        %733 = vmatprep.subr.bf16.mxu0 0
        %734 = vmatpush1.bf16.xpose.msra.mxu0 0
        %735 = vmatprep.subr.bf16.mxu0 0
        %736 = vmatpush1.bf16.xpose.msra.mxu0 0
        %737 = vmatprep.subr.bf16.mxu0 0
        %738 = vmatpush1.bf16.xpose.msra.mxu0 0
        %739 = vmatprep.subr.bf16.mxu0 0
        %740 = vmatpush1.bf16.xpose.msra.mxu0 0
        %741 = vmatprep.subr.bf16.mxu0 0
        %742 = vmatpush1.bf16.xpose.msra.mxu0 0
        %743 = vmatprep.subr.bf16.mxu0 0
        %744 = vmatpush1.bf16.xpose.msra.mxu0 0
        %745 = vmatprep.subr.bf16.mxu0 0
        %746 = vmatpush1.bf16.xpose.msra.mxu0 0
        %747 = vmatprep.subr.bf16.mxu0 0
        %748 = vmatpush1.bf16.xpose.msra.mxu0 0
        %749 = vmatprep.subr.bf16.mxu0 0
        %750 = vmatpush1.bf16.xpose.msra.mxu0 0
        %751 = vmatprep.subr.bf16.mxu0 0
        %752 = vmatpush1.bf16.xpose.msra.mxu0 0
        %753 = vmatprep.subr.bf16.mxu0 0
        %754 = vmatpush1.bf16.xpose.msra.mxu0 0
        %755 = vmatprep.subr.bf16.mxu0 0
        %756 = vmatpush1.bf16.xpose.msra.mxu0 0
        %757 = vmatprep.mubr.bf16.mxu0 0
        %758 = vmatmul.mubr.bf16.gmra.mrb[0].mxu0 %v720
        %v759 = vpop.f32.mrb[0].mxu0
        %v760 = vadd.f32 %v714, %v759
        %v761 = vpop.f32.mrb[0].mxu0
        %v762 = vpop.f32.mrb[0].mxu0
        %v763 = vpop.f32.mrb[0].mxu0
        %764 = vdwg.mxu0
        %v765 = vsel %vm718, %v760, -inf
        %766 = vmax.xlane.f32.xlu0 %v765
        %v767 = vpop.xlane.xlu0 %766
        %v768 = vsub.f32 %v760, %v767
        %v769 = vmul.f32 %v768, 1.442695
        %v770 = vpow.pop %v769
        %v771 = vsel %vm718, %v770, 0.0
        %772 = vadd.xlane.f32.xlu0 %v771
        %v773 = vpop.xlane.xlu0 %772
        %v774 = vrcp.pop %v773
        %v775 = vmul.f32 %v770, %v774
        %v776 = vpack.c.bf16 %v775, %v775
        %v778 = vsel %vm718, %v776, 0
        %vm780 = vcmask 1043456
        %v782 = vsel %vm780, %v716, 0
        %784 = vmatprep.subr.bf16.mxu0 0
        %785 = vmatpush1.bf16.msra.mxu0 %v782
        %786 = vmatprep.subr.bf16.mxu0 0
        %787 = vmatpush1.bf16.msra.mxu0 0
        %788 = vmatprep.subr.bf16.mxu0 0
        %789 = vmatpush1.bf16.msra.mxu0 0
        %790 = vmatprep.subr.bf16.mxu0 0
        %791 = vmatpush1.bf16.msra.mxu0 0
        %792 = vmatprep.subr.bf16.mxu0 0
        %793 = vmatpush1.bf16.msra.mxu0 0
        %794 = vmatprep.subr.bf16.mxu0 0
        %795 = vmatpush1.bf16.msra.mxu0 0
        %796 = vmatprep.subr.bf16.mxu0 0
        %797 = vmatpush1.bf16.msra.mxu0 0
        %798 = vmatprep.subr.bf16.mxu0 0
        %799 = vmatpush1.bf16.msra.mxu0 0
        %800 = vmatprep.subr.bf16.mxu0 0
        %801 = vmatpush1.bf16.msra.mxu0 0
        %802 = vmatprep.subr.bf16.mxu0 0
        %803 = vmatpush1.bf16.msra.mxu0 0
        %804 = vmatprep.subr.bf16.mxu0 0
        %805 = vmatpush1.bf16.msra.mxu0 0
        %806 = vmatprep.subr.bf16.mxu0 0
        %807 = vmatpush1.bf16.msra.mxu0 0
        %808 = vmatprep.subr.bf16.mxu0 0
        %809 = vmatpush1.bf16.msra.mxu0 0
        %810 = vmatprep.subr.bf16.mxu0 0
        %811 = vmatpush1.bf16.msra.mxu0 0
        %812 = vmatprep.subr.bf16.mxu0 0
        %813 = vmatpush1.bf16.msra.mxu0 0
        %814 = vmatprep.subr.bf16.mxu0 0
        %815 = vmatpush1.bf16.msra.mxu0 0
        %816 = vmatprep.mubr.bf16.mxu0 0
        %817 = vmatmul.mubr.bf16.gmra.mrb[0].mxu0 %v778
        %v818 = vpop.f32.mrb[0].mxu0
        %v819 = vadd.f32 0.0, %v818
        %v820 = vpop.f32.mrb[0].mxu0
        %v821 = vpop.f32.mrb[0].mxu0
        %v822 = vpop.f32.mrb[0].mxu0
        %823 = vdwg.mxu0
        %825 = vrot.lane.b32.xlu0 %v717, 120
        %v826 = vpop.permute.xlu0 %825
        %v828 = vunpack.c.l.b16 %v715
        %v829 = vpack.c.b16 %v828, %v828
        %830 = vrot.lane.b32.xlu0 %v829, 120
        %v831 = vpop.permute.xlu0 %830
        %v833 = vsel %vm718, %v826, 0
        %v836 = vsel %vm718, %v831, 0
        %838 = vmatprep.subr.bf16.mxu0 0
        %839 = vmatpush1.bf16.xpose.msra.mxu0 %v836
        %840 = vmatprep.subr.bf16.mxu0 0
        %841 = vmatpush1.bf16.xpose.msra.mxu0 0
        %842 = vmatprep.subr.bf16.mxu0 0
        %843 = vmatpush1.bf16.xpose.msra.mxu0 0
        %844 = vmatprep.subr.bf16.mxu0 0
        %845 = vmatpush1.bf16.xpose.msra.mxu0 0
        %846 = vmatprep.subr.bf16.mxu0 0
        %847 = vmatpush1.bf16.xpose.msra.mxu0 0
        %848 = vmatprep.subr.bf16.mxu0 0
        %849 = vmatpush1.bf16.xpose.msra.mxu0 0
        %850 = vmatprep.subr.bf16.mxu0 0
        %851 = vmatpush1.bf16.xpose.msra.mxu0 0
        %852 = vmatprep.subr.bf16.mxu0 0
        %853 = vmatpush1.bf16.xpose.msra.mxu0 0
        %854 = vmatprep.subr.bf16.mxu0 0
        %855 = vmatpush1.bf16.xpose.msra.mxu0 0
        %856 = vmatprep.subr.bf16.mxu0 0
        %857 = vmatpush1.bf16.xpose.msra.mxu0 0
        %858 = vmatprep.subr.bf16.mxu0 0
        %859 = vmatpush1.bf16.xpose.msra.mxu0 0
        %860 = vmatprep.subr.bf16.mxu0 0
        %861 = vmatpush1.bf16.xpose.msra.mxu0 0
        %862 = vmatprep.subr.bf16.mxu0 0
        %863 = vmatpush1.bf16.xpose.msra.mxu0 0
        %864 = vmatprep.subr.bf16.mxu0 0
        %865 = vmatpush1.bf16.xpose.msra.mxu0 0
        %866 = vmatprep.subr.bf16.mxu0 0
        %867 = vmatpush1.bf16.xpose.msra.mxu0 0
        %868 = vmatprep.subr.bf16.mxu0 0
        %869 = vmatpush1.bf16.xpose.msra.mxu0 0
        %870 = vmatprep.mubr.bf16.mxu0 0
        %871 = vmatmul.mubr.bf16.gmra.mrb[0].mxu0 %v833
        %v872 = vpop.f32.mrb[0].mxu0
        %v873 = vadd.f32 %v714, %v872
        %v874 = vpop.f32.mrb[0].mxu0
        %v875 = vpop.f32.mrb[0].mxu0
        %v876 = vpop.f32.mrb[0].mxu0
        %877 = vdwg.mxu0
        %v878 = vsel %vm718, %v873, -inf
        %879 = vmax.xlane.f32.xlu0 %v878
        %v880 = vpop.xlane.xlu0 %879
        %v881 = vsub.f32 %v873, %v880
        %v882 = vmul.f32 %v881, 1.442695
        %v883 = vpow.pop %v882
        %v884 = vsel %vm718, %v883, 0.0
        %885 = vadd.xlane.f32.xlu0 %v884
        %v886 = vpop.xlane.xlu0 %885
        %v887 = vrcp.pop %v886
        %v888 = vmul.f32 %v883, %v887
        %v889 = vpack.c.bf16 %v888, %v888
        %v891 = vunpack.c.l.b16 %v716
        %v892 = vpack.c.b16 %v891, %v891
        %893 = vrot.lane.b32.xlu0 %v892, 120
        %v894 = vpop.permute.xlu0 %893
        %v896 = vsel %vm718, %v889, 0
        %v899 = vsel %vm780, %v894, 0
        %901 = vmatprep.subr.bf16.mxu0 0
        %902 = vmatpush1.bf16.msra.mxu0 %v899
        %903 = vmatprep.subr.bf16.mxu0 0
        %904 = vmatpush1.bf16.msra.mxu0 0
        %905 = vmatprep.subr.bf16.mxu0 0
        %906 = vmatpush1.bf16.msra.mxu0 0
        %907 = vmatprep.subr.bf16.mxu0 0
        %908 = vmatpush1.bf16.msra.mxu0 0
        %909 = vmatprep.subr.bf16.mxu0 0
        %910 = vmatpush1.bf16.msra.mxu0 0
        %911 = vmatprep.subr.bf16.mxu0 0
        %912 = vmatpush1.bf16.msra.mxu0 0
        %913 = vmatprep.subr.bf16.mxu0 0
        %914 = vmatpush1.bf16.msra.mxu0 0
        %915 = vmatprep.subr.bf16.mxu0 0
        %916 = vmatpush1.bf16.msra.mxu0 0
        %917 = vmatprep.subr.bf16.mxu0 0
        %918 = vmatpush1.bf16.msra.mxu0 0
        %919 = vmatprep.subr.bf16.mxu0 0
        %920 = vmatpush1.bf16.msra.mxu0 0
        %921 = vmatprep.subr.bf16.mxu0 0
        %922 = vmatpush1.bf16.msra.mxu0 0
        %923 = vmatprep.subr.bf16.mxu0 0
        %924 = vmatpush1.bf16.msra.mxu0 0
        %925 = vmatprep.subr.bf16.mxu0 0
        %926 = vmatpush1.bf16.msra.mxu0 0
        %927 = vmatprep.subr.bf16.mxu0 0
        %928 = vmatpush1.bf16.msra.mxu0 0
        %929 = vmatprep.subr.bf16.mxu0 0
        %930 = vmatpush1.bf16.msra.mxu0 0
        %931 = vmatprep.subr.bf16.mxu0 0
        %932 = vmatpush1.bf16.msra.mxu0 0
        %933 = vmatprep.mubr.bf16.mxu0 0
        %934 = vmatmul.mubr.bf16.gmra.mrb[0].mxu0 %v896
        %v935 = vpop.f32.mrb[0].mxu0
        %v936 = vadd.f32 0.0, %v935
        %v937 = vpop.f32.mrb[0].mxu0
        %v938 = vpop.f32.mrb[0].mxu0
        %v939 = vpop.f32.mrb[0].mxu0
        %940 = vdwg.mxu0
        %941 = vrot.lane.b32.xlu0 %v717, 112
        %v942 = vpop.permute.xlu0 %941
        %943 = vrot.lane.b32.xlu0 %v829, 112
        %v944 = vpop.permute.xlu0 %943
        %v946 = vsel %vm718, %v942, 0
        %v949 = vsel %vm718, %v944, 0
        %951 = vmatprep.subr.bf16.mxu0 0
        %952 = vmatpush1.bf16.xpose.msra.mxu0 %v949
        %953 = vmatprep.subr.bf16.mxu0 0
        %954 = vmatpush1.bf16.xpose.msra.mxu0 0
        %955 = vmatprep.subr.bf16.mxu0 0
        %956 = vmatpush1.bf16.xpose.msra.mxu0 0
        %957 = vmatprep.subr.bf16.mxu0 0
        %958 = vmatpush1.bf16.xpose.msra.mxu0 0
        %959 = vmatprep.subr.bf16.mxu0 0
        %960 = vmatpush1.bf16.xpose.msra.mxu0 0
        %961 = vmatprep.subr.bf16.mxu0 0
        %962 = vmatpush1.bf16.xpose.msra.mxu0 0
        %963 = vmatprep.subr.bf16.mxu0 0
        %964 = vmatpush1.bf16.xpose.msra.mxu0 0
        %965 = vmatprep.subr.bf16.mxu0 0
        %966 = vmatpush1.bf16.xpose.msra.mxu0 0
        %967 = vmatprep.subr.bf16.mxu0 0
        %968 = vmatpush1.bf16.xpose.msra.mxu0 0
        %969 = vmatprep.subr.bf16.mxu0 0
        %970 = vmatpush1.bf16.xpose.msra.mxu0 0
        %971 = vmatprep.subr.bf16.mxu0 0
        %972 = vmatpush1.bf16.xpose.msra.mxu0 0
        %973 = vmatprep.subr.bf16.mxu0 0
        %974 = vmatpush1.bf16.xpose.msra.mxu0 0
        %975 = vmatprep.subr.bf16.mxu0 0
        %976 = vmatpush1.bf16.xpose.msra.mxu0 0
        %977 = vmatprep.subr.bf16.mxu0 0
        %978 = vmatpush1.bf16.xpose.msra.mxu0 0
        %979 = vmatprep.subr.bf16.mxu0 0
        %980 = vmatpush1.bf16.xpose.msra.mxu0 0
        %981 = vmatprep.subr.bf16.mxu0 0
        %982 = vmatpush1.bf16.xpose.msra.mxu0 0
        %983 = vmatprep.mubr.bf16.mxu0 0
        %984 = vmatmul.mubr.bf16.gmra.mrb[0].mxu0 %v946
        %v985 = vpop.f32.mrb[0].mxu0
        %v986 = vadd.f32 %v714, %v985
        %v987 = vpop.f32.mrb[0].mxu0
        %v988 = vpop.f32.mrb[0].mxu0
        %v989 = vpop.f32.mrb[0].mxu0
        %990 = vdwg.mxu0
        %v991 = vsel %vm718, %v986, -inf
        %992 = vmax.xlane.f32.xlu0 %v991
        %v993 = vpop.xlane.xlu0 %992
        %v994 = vsub.f32 %v986, %v993
        %v995 = vmul.f32 %v994, 1.442695
        %v996 = vpow.pop %v995
        %v997 = vsel %vm718, %v996, 0.0
        %998 = vadd.xlane.f32.xlu0 %v997
        %v999 = vpop.xlane.xlu0 %998
        %v1000 = vrcp.pop %v999
        %v1001 = vmul.f32 %v996, %v1000
        %v1002 = vpack.c.bf16 %v1001, %v1001
        %1003 = vrot.lane.b32.xlu0 %v892, 112
        %v1004 = vpop.permute.xlu0 %1003
        %v1006 = vsel %vm718, %v1002, 0
        %v1009 = vsel %vm780, %v1004, 0
        %1011 = vmatprep.subr.bf16.mxu0 0
        %1012 = vmatpush1.bf16.msra.mxu0 %v1009
        %1013 = vmatprep.subr.bf16.mxu0 0
        %1014 = vmatpush1.bf16.msra.mxu0 0
        %1015 = vmatprep.subr.bf16.mxu0 0
        %1016 = vmatpush1.bf16.msra.mxu0 0
        %1017 = vmatprep.subr.bf16.mxu0 0
        %1018 = vmatpush1.bf16.msra.mxu0 0
        %1019 = vmatprep.subr.bf16.mxu0 0
        %1020 = vmatpush1.bf16.msra.mxu0 0
        %1021 = vmatprep.subr.bf16.mxu0 0
        %1022 = vmatpush1.bf16.msra.mxu0 0
        %1023 = vmatprep.subr.bf16.mxu0 0
        %1024 = vmatpush1.bf16.msra.mxu0 0
        %1025 = vmatprep.subr.bf16.mxu0 0
        %1026 = vmatpush1.bf16.msra.mxu0 0
        %1027 = vmatprep.subr.bf16.mxu0 0
        %1028 = vmatpush1.bf16.msra.mxu0 0
        %1029 = vmatprep.subr.bf16.mxu0 0
        %1030 = vmatpush1.bf16.msra.mxu0 0
        %1031 = vmatprep.subr.bf16.mxu0 0
        %1032 = vmatpush1.bf16.msra.mxu0 0
        %1033 = vmatprep.subr.bf16.mxu0 0
        %1034 = vmatpush1.bf16.msra.mxu0 0
        %1035 = vmatprep.subr.bf16.mxu0 0
        %1036 = vmatpush1.bf16.msra.mxu0 0
        %1037 = vmatprep.subr.bf16.mxu0 0
        %1038 = vmatpush1.bf16.msra.mxu0 0
        %1039 = vmatprep.subr.bf16.mxu0 0
        %1040 = vmatpush1.bf16.msra.mxu0 0
        %1041 = vmatprep.subr.bf16.mxu0 0
        %1042 = vmatpush1.bf16.msra.mxu0 0
        %1043 = vmatprep.mubr.bf16.mxu0 0
        %1044 = vmatmul.mubr.bf16.gmra.mrb[0].mxu0 %v1006
        %v1045 = vpop.f32.mrb[0].mxu0
        %v1046 = vadd.f32 0.0, %v1045
        %v1047 = vpop.f32.mrb[0].mxu0
        %v1048 = vpop.f32.mrb[0].mxu0
        %v1049 = vpop.f32.mrb[0].mxu0
        %1050 = vdwg.mxu0
        %1051 = vrot.lane.b32.xlu0 %v717, 104
        %v1052 = vpop.permute.xlu0 %1051
        %1053 = vrot.lane.b32.xlu0 %v829, 104
        %v1054 = vpop.permute.xlu0 %1053
        %v1056 = vsel %vm718, %v1052, 0
        %v1059 = vsel %vm718, %v1054, 0
        %1061 = vmatprep.subr.bf16.mxu0 0
        %1062 = vmatpush1.bf16.xpose.msra.mxu0 %v1059
        %1063 = vmatprep.subr.bf16.mxu0 0
        %1064 = vmatpush1.bf16.xpose.msra.mxu0 0
        %1065 = vmatprep.subr.bf16.mxu0 0
        %1066 = vmatpush1.bf16.xpose.msra.mxu0 0
        %1067 = vmatprep.subr.bf16.mxu0 0
        %1068 = vmatpush1.bf16.xpose.msra.mxu0 0
        %1069 = vmatprep.subr.bf16.mxu0 0
        %1070 = vmatpush1.bf16.xpose.msra.mxu0 0
        %1071 = vmatprep.subr.bf16.mxu0 0
        %1072 = vmatpush1.bf16.xpose.msra.mxu0 0
        %1073 = vmatprep.subr.bf16.mxu0 0
        %1074 = vmatpush1.bf16.xpose.msra.mxu0 0
        %1075 = vmatprep.subr.bf16.mxu0 0
        %1076 = vmatpush1.bf16.xpose.msra.mxu0 0
        %1077 = vmatprep.subr.bf16.mxu0 0
        %1078 = vmatpush1.bf16.xpose.msra.mxu0 0
        %1079 = vmatprep.subr.bf16.mxu0 0
        %1080 = vmatpush1.bf16.xpose.msra.mxu0 0
        %1081 = vmatprep.subr.bf16.mxu0 0
        %1082 = vmatpush1.bf16.xpose.msra.mxu0 0
        %1083 = vmatprep.subr.bf16.mxu0 0
        %1084 = vmatpush1.bf16.xpose.msra.mxu0 0
        %1085 = vmatprep.subr.bf16.mxu0 0
        %1086 = vmatpush1.bf16.xpose.msra.mxu0 0
        %1087 = vmatprep.subr.bf16.mxu0 0
        %1088 = vmatpush1.bf16.xpose.msra.mxu0 0
        %1089 = vmatprep.subr.bf16.mxu0 0
        %1090 = vmatpush1.bf16.xpose.msra.mxu0 0
        %1091 = vmatprep.subr.bf16.mxu0 0
        %1092 = vmatpush1.bf16.xpose.msra.mxu0 0
        %1093 = vmatprep.mubr.bf16.mxu0 0
        %1094 = vmatmul.mubr.bf16.gmra.mrb[0].mxu0 %v1056
        %v1095 = vpop.f32.mrb[0].mxu0
        %v1096 = vadd.f32 %v714, %v1095
        %v1097 = vpop.f32.mrb[0].mxu0
        %v1098 = vpop.f32.mrb[0].mxu0
        %v1099 = vpop.f32.mrb[0].mxu0
        %1100 = vdwg.mxu0
        %v1101 = vsel %vm718, %v1096, -inf
        %1102 = vmax.xlane.f32.xlu0 %v1101
        %v1103 = vpop.xlane.xlu0 %1102
        %v1104 = vsub.f32 %v1096, %v1103
        %v1105 = vmul.f32 %v1104, 1.442695
        %v1106 = vpow.pop %v1105
        %v1107 = vsel %vm718, %v1106, 0.0
        %1108 = vadd.xlane.f32.xlu0 %v1107
        %v1109 = vpop.xlane.xlu0 %1108
        %v1110 = vrcp.pop %v1109
        %v1111 = vmul.f32 %v1106, %v1110
        %v1112 = vpack.c.bf16 %v1111, %v1111
        %1113 = vrot.lane.b32.xlu0 %v892, 104
        %v1114 = vpop.permute.xlu0 %1113
        %v1116 = vsel %vm718, %v1112, 0
        %v1119 = vsel %vm780, %v1114, 0
        %1121 = vmatprep.subr.bf16.mxu0 0
        %1122 = vmatpush1.bf16.msra.mxu0 %v1119
        %1123 = vmatprep.subr.bf16.mxu0 0
        %1124 = vmatpush1.bf16.msra.mxu0 0
        %1125 = vmatprep.subr.bf16.mxu0 0
        %1126 = vmatpush1.bf16.msra.mxu0 0
        %1127 = vmatprep.subr.bf16.mxu0 0
        %1128 = vmatpush1.bf16.msra.mxu0 0
        %1129 = vmatprep.subr.bf16.mxu0 0
        %1130 = vmatpush1.bf16.msra.mxu0 0
        %1131 = vmatprep.subr.bf16.mxu0 0
        %1132 = vmatpush1.bf16.msra.mxu0 0
        %1133 = vmatprep.subr.bf16.mxu0 0
        %1134 = vmatpush1.bf16.msra.mxu0 0
        %1135 = vmatprep.subr.bf16.mxu0 0
        %1136 = vmatpush1.bf16.msra.mxu0 0
        %1137 = vmatprep.subr.bf16.mxu0 0
        %1138 = vmatpush1.bf16.msra.mxu0 0
        %1139 = vmatprep.subr.bf16.mxu0 0
        %1140 = vmatpush1.bf16.msra.mxu0 0
        %1141 = vmatprep.subr.bf16.mxu0 0
        %1142 = vmatpush1.bf16.msra.mxu0 0
        %1143 = vmatprep.subr.bf16.mxu0 0
        %1144 = vmatpush1.bf16.msra.mxu0 0
        %1145 = vmatprep.subr.bf16.mxu0 0
        %1146 = vmatpush1.bf16.msra.mxu0 0
        %1147 = vmatprep.subr.bf16.mxu0 0
        %1148 = vmatpush1.bf16.msra.mxu0 0
        %1149 = vmatprep.subr.bf16.mxu0 0
        %1150 = vmatpush1.bf16.msra.mxu0 0
        %1151 = vmatprep.subr.bf16.mxu0 0
        %1152 = vmatpush1.bf16.msra.mxu0 0
        %1153 = vmatprep.mubr.bf16.mxu0 0
        %1154 = vmatmul.mubr.bf16.gmra.mrb[0].mxu0 %v1116
        %v1155 = vpop.f32.mrb[0].mxu0
        %v1156 = vadd.f32 0.0, %v1155
        %v1157 = vpop.f32.mrb[0].mxu0
        %v1158 = vpop.f32.mrb[0].mxu0
        %v1159 = vpop.f32.mrb[0].mxu0
        %1160 = vdwg.mxu0
        %1162 = vrot.lane.b32.xlu0 %v936, 8
        %v1163 = vpop.permute.xlu0 %1162
        %1166 = vrot.lane.b32.xlu0 %v1046, 16
        %v1167 = vpop.permute.xlu0 %1166
        %1170 = vrot.lane.b32.xlu0 %v1156, 24
        %v1171 = vpop.permute.xlu0 %1170
        %v1173 = vsel %vm718, %v819, %v1163
        %vm1174 = vcmask 130048
        %v1175 = vsel %vm1174, %v1173, %v1167
        %vm1176 = vcmask 195584
        %v1177 = vsel %vm1176, %v1175, %v1171
        %v1178 = vpack.c.bf16 %v1177, %v1177
        %v1179 = vld [vmem:[#allocation15] sm:$0xf]
        %v1180 = vld [vmem:[#allocation15 + $0x4] sm:$0xf]
        %v1181 = vld [vmem:[#allocation15 + $0x8] sm:$0xf]
        %v1182 = vld [vmem:[#allocation15 + $0xc] sm:$0xf]
        %v1183 = vld [vmem:[%s8] sm:$0x1]
        %v1185 = vlaneseq
        %v1186 = vshrl.u32 %v1185, 7
        %v1187 = vsub.s32 0, %v1186
        %v1188 = vrot.slane %v1183, %v1187
        %v1194 = vunpack.c.l.b16 %v1179
        %v1195 = vunpack.c.l.b16 %v1180
        %v1196 = vunpack.c.l.b16 %v1181
        %v1197 = vunpack.c.l.b16 %v1182
        %v1198 = vpack.c.b16 %v1195, %v1194
        %v1199 = vpack.c.b16 %v1197, %v1196
        %v1203 = vsel %vm667, %v1178, 0
        %1205 = vmatprep.subr.bf16.mxu0 0
        %1206 = vmatpush1.bf16.msra.mxu0 %v1198
        %1207 = vmatprep.subr.bf16.mxu0 0
        %1208 = vmatpush1.bf16.msra.mxu0 %v1199
        %1209 = vmatprep.subr.bf16.mxu0 0
        %1210 = vmatpush1.bf16.msra.mxu0 0
        %1211 = vmatprep.subr.bf16.mxu0 0
        %1212 = vmatpush1.bf16.msra.mxu0 0
        %1213 = vmatprep.subr.bf16.mxu0 0
        %1214 = vmatpush1.bf16.msra.mxu0 0
        %1215 = vmatprep.subr.bf16.mxu0 0
        %1216 = vmatpush1.bf16.msra.mxu0 0
        %1217 = vmatprep.subr.bf16.mxu0 0
        %1218 = vmatpush1.bf16.msra.mxu0 0
        %1219 = vmatprep.subr.bf16.mxu0 0
        %1220 = vmatpush1.bf16.msra.mxu0 0
        %1221 = vmatprep.subr.bf16.mxu0 0
        %1222 = vmatpush1.bf16.msra.mxu0 0
        %1223 = vmatprep.subr.bf16.mxu0 0
        %1224 = vmatpush1.bf16.msra.mxu0 0
        %1225 = vmatprep.subr.bf16.mxu0 0
        %1226 = vmatpush1.bf16.msra.mxu0 0
        %1227 = vmatprep.subr.bf16.mxu0 0
        %1228 = vmatpush1.bf16.msra.mxu0 0
        %1229 = vmatprep.subr.bf16.mxu0 0
        %1230 = vmatpush1.bf16.msra.mxu0 0
        %1231 = vmatprep.subr.bf16.mxu0 0
        %1232 = vmatpush1.bf16.msra.mxu0 0
        %1233 = vmatprep.subr.bf16.mxu0 0
        %1234 = vmatpush1.bf16.msra.mxu0 0
        %1235 = vmatprep.subr.bf16.mxu0 0
        %1236 = vmatpush1.bf16.msra.mxu0 0
        %1237 = vmatprep.mubr.bf16.mxu0 0
        %1238 = vmatmul.mubr.bf16.gmra.mrb[0].mxu0 %v1203
        %v1239 = vpop.f32.mrb[0].mxu0
        %v1240 = vadd.f32 %v1188, %v1239
        %v1241 = vpop.f32.mrb[0].mxu0
        %v1242 = vpop.f32.mrb[0].mxu0
        %v1243 = vpop.f32.mrb[0].mxu0
        %1244 = vdwg.mxu0
        %1245 = vst.msk [vmem:[%s518] sm:$0xff] %vm667, %v1240
        %s1246 = sand.u32 %s268, 1
        %s1247 = scalar_lea.sflag [#allocation6], %s1246
        %s1248 = sand.u32 %s268, 1
        %s1249 = smul.addr %s1248, 8
        %s1250 = scalar_lea.vmem [#allocation16], %s1249
        // Predicated region
        $region89: #{tpu_custom_call.1} parent=55 // pred_check
          %p1251 = pneg %p278
        $region90: #{tpu_custom_call.1} parent=55 // pred_check_branch
          %1253 = sbr.rel (%p1251) target = $region92
        $region91: #{tpu_custom_call.1} parent=55 // pred_region
          %s1255 = ssub.s32 128, 128
          %1256 = vsyncadd %s1247, %s1255
          %s1257 = sadd.s32 %s38, %s37
          %s1258 = smul.addr %s1257, 128
          %s1259 = scalar_lea.hbm %s9, %s1258
          %s1261 = sshll.u32 %s1250, 4
          %s1262 = int_to_ptr.vmem [resolvable:$true] %s1261
          %1264 = dma.vmem_to_hbm [thread:$0]  %s1262, 128, %s1259, %s1247
        $region92: #{tpu_custom_call.1} parent=55 // pred_fallthru
          _
      $region56: #{tpu_custom_call.1} parent=5 // pred_fallthru
        _
      %p1265 = scmp.le.s32.totalorder 2, %s28
      // Predicated region
      $region93: #{tpu_custom_call.1} parent=5 // pred_check
        %p1266 = pneg %p1265
      $region94: #{tpu_custom_call.1} parent=5 // pred_check_branch
        %1268 = sbr.rel (%p1266) target = $region96
      $region95: #{tpu_custom_call.1} parent=5 // pred_region
        %s1269 = ssub.s32 %s28, 2
        // Predicated region
        $region97: #{tpu_custom_call.1} parent=95 // pred_check
          %p1270 = pneg %p284
        $region98: #{tpu_custom_call.1} parent=95 // pred_check_branch
          %1272 = sbr.rel (%p1270) target = $region100
        $region99: #{tpu_custom_call.1} parent=95 // pred_region
          %s1273 = sand.u32 %s269, 1
          %s1274 = scalar_lea.sflag [#allocation6], %s1273
          %s1275 = sand.u32 %s269, 1
          %s1276 = smul.addr %s1275, 8
          %s1277 = scalar_lea.vmem [#allocation16], %s1276
          %1278 = dma.done %s1274, 128
        $region100: #{tpu_custom_call.1} parent=95 // pred_fallthru
          _
      $region96: #{tpu_custom_call.1} parent=5 // pred_fallthru
        _
    $region6: #{tpu_custom_call.1} parent=1 // loop_footer
      %s32 = sadd.s32 1, %s28
    $region7: #{tpu_custom_call.1} parent=1 // loop_footer_branch
      %27 = sbr.rel target = $region3
    $region8: #{tpu_custom_call.1} parent=1 // loop_exit
      _
    %1279 = vsyncpa [#allocation5], 1
    %s1280 = scalar_lea.sflag [#allocation5], 1
    %1281 = vsyncpa %s1280, 1
    %1282 = vsyncpa [#allocation8], 1
    %s1283 = scalar_lea.sflag [#allocation8], 1
    %1284 = vsyncpa %s1283, 1
    %1285 = vsyncpa [#allocation11], 1
    %s1286 = scalar_lea.sflag [#allocation11], 1
    %1287 = vsyncpa %s1286, 1
    %1288 = vsyncpa [#allocation14], 1
    %1289 = vsyncpa [#allocation6], 1
    %s1290 = scalar_lea.sflag [#allocation6], 1
    %1291 = vsyncpa %s1290, 1

</llo_original>
